<compile_context>
chip_gen: v6e
topology: v6e:2x2x1
jax: 0.10.0
libtpu: 0.0.40
codegen_flags: <defaults>
</compile_context>

<pallas_src>
import math
import functools

import jax
import jax.numpy as jnp
from jax import lax
from jax.experimental import pallas as pl
from jax.experimental.pallas import tpu as pltpu


_VMEM_LIMIT_BYTES = 48 * 1024 * 1024  # safe on v5e/v6e (128 MiB) and v7x (64 MiB)


# ----------------------------- Pallas kernels ------------------------------ #

def _linear_kernel(x_ref, w_ref, b_ref, o_ref, acc_ref):
    """One (tm, tn) output tile of  y = x @ W + b,  reduced over the k grid axis."""
    k = pl.program_id(2)

    @pl.when(k == 0)
    def _():
        acc_ref[...] = jnp.zeros_like(acc_ref)

    acc_ref[...] += jnp.dot(x_ref[...], w_ref[...],
                            preferred_element_type=jnp.float32)

    @pl.when(k == pl.num_programs(2) - 1)
    def _():
        o_ref[...] = (acc_ref[...] + b_ref[...].astype(jnp.float32)).astype(o_ref.dtype)


def _attn_kernel(scale, qkv_ref, ctx_ref, probs_ref):
    """Scaled-dot-product attention for one batch element, all heads at once.

    qkv_ref:   (1, S, 3, H, D)   fused Q/K/V block (head split done by reshape)
    ctx_ref:   (1, S, H*D)       merged-head context slab (lane-dense output)
    probs_ref: (1, H, S, S)      softmax attention probabilities (returned weights)
    """
    qkv = qkv_ref[...].astype(jnp.float32)        # (1, S, 3, H, D)
    _, S, _, H, D = qkv.shape

    # Fold 1/sqrt(D) into q: O(S*D) multiplies instead of O(S*S) on the scores.
    q = qkv[0, :, 0] * scale                      # (S, H, D)
    k = qkv[0, :, 1]                              # (S, H, D)
    v = qkv[0, :, 2]                              # (S, H, D)

    # scores[h, i, j] = sum_d q[i, h, d] * k[j, h, d]
    # Head-batched NT dot_general -> no explicit k.T in the kernel.
    scores = lax.dot_general(
        q, k, (((2,), (2,)), ((1,), (1,))),
        preferred_element_type=jnp.float32)        # (H, S, S)

    # numerically-stable softmax along the key axis
    m = jnp.max(scores, axis=-1, keepdims=True)
    e = jnp.exp(scores - m)
    denom = jnp.sum(e, axis=-1, keepdims=True)
    # approx=False: keeps the returned probabilities within the 1e-5 tolerance.
    probs = e * pl.reciprocal(denom, approx=False)
    probs_ref[0] = probs.astype(probs_ref.dtype)

    # ctx[h, i, d] = sum_j probs[h, i, j] * v[j, h, d]
    ctx = lax.dot_general(
        probs, v, (((2,), (0,)), ((0,), (1,))),
        preferred_element_type=jnp.float32)        # (H, S, D)

    # Merge heads in-VMEM and write a lane-dense (S, H*D) slab; this replaces
    # the XLA-side permute(0,2,1,3).reshape of the original module.
    ctx = ctx.transpose(1, 0, 2).reshape(S, H * D)
    ctx_ref[0] = ctx.astype(ctx_ref.dtype)

    # TODO(synk): for large S, tile the KV axis (flash-style streaming) and
    # stream the (S, S) probs tiles to HBM instead of holding them whole in VMEM.


# ------------------------------ JAX wrappers -------------------------------- #

def _pick_tile(dim, preferred):
    """`preferred` if it evenly divides `dim`, else fall back to the full dim.

    The full-dim fallback keeps block shapes legal w.r.t. the (8,128) rule for
    small / unaligned problems; real model dims (multiples of 128/256) get the
    preferred MXU-sized tiles.
    """
    return preferred if dim % preferred == 0 else dim


def linear_pallas(x2d, w_in_out, bias, *, tm=128, tn=256, tk=512):
    """y = x2d @ W + b as a tiled, pipelined Pallas GEMM.

    x2d: (M, K), w_in_out: (K, N) already in [in, out] layout, bias: (N,)
    """
    M, K = x2d.shape
    N = w_in_out.shape[1]
    tm = _pick_tile(M, tm)
    tn = _pick_tile(N, tn)
    tk = _pick_tile(K, tk)
    b2d = bias.reshape(1, N)

    return pl.pallas_call(
        _linear_kernel,
        out_shape=jax.ShapeDtypeStruct((M, N), x2d.dtype),
        grid=(M // tm, N // tn, K // tk),
        in_specs=[
            pl.BlockSpec((tm, tk), lambda i, j, k: (i, k)),
            pl.BlockSpec((tk, tn), lambda i, j, k: (k, j)),
            pl.BlockSpec((1, tn), lambda i, j, k: (0, j)),
        ],
        out_specs=pl.BlockSpec((tm, tn), lambda i, j, k: (i, j)),
        scratch_shapes=[pltpu.VMEM((tm, tn), jnp.float32)],
        compiler_params=pltpu.CompilerParams(
            dimension_semantics=("parallel", "parallel", "arbitrary"),
            vmem_limit_bytes=_VMEM_LIMIT_BYTES,
        ),
    )(x2d, w_in_out, b2d)


def attention_core_pallas(qkv, num_heads, head_dim):
    """qkv: (B, S, 3, H, D) -> (context (B, S, H*D), probs (B, H, S, S))."""
    B, S = qkv.shape[0], qkv.shape[1]
    E = num_heads * head_dim
    scale = 1.0 / math.sqrt(head_dim)
    kernel = functools.partial(_attn_kernel, scale)

    ctx, probs = pl.pallas_call(
        kernel,
        out_shape=(
            jax.ShapeDtypeStruct((B, S, E), qkv.dtype),
            jax.ShapeDtypeStruct((B, num_heads, S, S), qkv.dtype),
        ),
        grid=(B,),
        in_specs=[
            pl.BlockSpec((1, S, 3, num_heads, head_dim),
                         lambda b: (b, 0, 0, 0, 0)),
        ],
        out_specs=(
            pl.BlockSpec((1, S, E), lambda b: (b, 0, 0)),
            pl.BlockSpec((1, num_heads, S, S), lambda b: (b, 0, 0, 0)),
        ),
        compiler_params=pltpu.CompilerParams(
            dimension_semantics=("parallel",),
            vmem_limit_bytes=_VMEM_LIMIT_BYTES,
        ),
    )(qkv)
    return ctx, probs


def attention_forward(hidden_states, kparams, num_heads):
    """Pallas implementation of Attention.forward.

    hidden_states: (B, S, E); kparams are the pre-fused / pre-transposed params.
    Returns (attention_output (B, S, E), weights (B, H, S, S)).
    """
    B, S, E = hidden_states.shape
    head_dim = E // num_heads

    x2d = hidden_states.reshape(B * S, E)

    # Fused QKV projection: one GEMM instead of three (3x fewer x reads).
    qkv2d = linear_pallas(x2d, kparams["w_qkv"], kparams["b_qkv"])      # (B*S, 3E)

    # Transpose-free reshape into (B, S, 3, H, D); head split handled in-kernel.
    qkv = qkv2d.reshape(B, S, 3, num_heads, head_dim)

    ctx, probs = attention_core_pallas(qkv, num_heads, head_dim)        # (B,S,E),(B,H,S,S)

    # Output projection directly on the merged-head slab (no XLA transposes).
    out2d = linear_pallas(ctx.reshape(B * S, E), kparams["w_out"], kparams["b_out"])
    attention_output = out2d.reshape(B, S, E)

    # attn_dropout / proj_dropout have p = 0.0 -> identity.
    return attention_output, probs


# ------------------------------ parameters ---------------------------------- #

def init_params(key, emb_size):
    """PyTorch-layout params ([out, in] weights), uniform +/- 1/sqrt(fan_in)."""
    ks = jax.random.split(key, 8)
    bound = 1.0 / math.sqrt(emb_size)

    def u(k, shape):
        return jax.random.uniform(k, shape, jnp.float32, -bound, bound)

    return {
        "wq": u(ks[0], (emb_size, emb_size)), "bq": u(ks[1], (emb_size,)),
        "wk": u(ks[2], (emb_size, emb_size)), "bk": u(ks[3], (emb_size,)),
        "wv": u(ks[4], (emb_size, emb_size)), "bv": u(ks[5], (emb_size,)),
        "wo": u(ks[6], (emb_size, emb_size)), "bo": u(ks[7], (emb_size,)),
    }


def prepare_kernel_params(params):
    """One-time prep: transpose weights to [in, out] and fuse Q/K/V."""
    w_qkv = jnp.concatenate(
        [params["wq"].T, params["wk"].T, params["wv"].T], axis=1)   # (E, 3E)
    b_qkv = jnp.concatenate([params["bq"], params["bk"], params["bv"]])  # (3E,)
    return {
        "w_qkv": w_qkv, "b_qkv": b_qkv,
        "w_out": params["wo"].T, "b_out": params["bo"],
    }


# Pure-JAX reference for sanity checking (mirrors the PyTorch module).
def attention_reference(hidden_states, params, num_heads):
    B, S, E = hidden_states.shape
    D = E // num_heads
    q = hidden_states @ params["wq"].T + params["bq"]
    k = hidden_states @ params["wk"].T + params["bk"]
    v = hidden_states @ params["wv"].T + params["bv"]

    def split(t):
        return t.reshape(B, S, num_heads, D).transpose(0, 2, 1, 3)

    q, k, v = split(q), split(k), split(v)
    scores = jnp.einsum("bhqd,bhkd->bhqk", q, k) / math.sqrt(D)
    probs = jax.nn.softmax(scores, axis=-1)
    ctx = jnp.einsum("bhqk,bhkd->bhqd", probs, v)
    ctx = ctx.transpose(0, 2, 1, 3).reshape(B, S, E)
    out = ctx @ params["wo"].T + params["bo"]
    return out, probs


if __name__ == "__main__":
    B, S, E, H = 2, 8, 32, 4   # batch, seq, emb_size, num_heads (head_dim = 8)

    key = jax.random.PRNGKey(0)
    k_x, k_p = jax.random.split(key)
    hidden_states = jax.random.normal(k_x, (B, S, E), dtype=jnp.float32)
    params = init_params(k_p, E)
    kparams = prepare_kernel_params(params)   # one-time weight transpose/fusion

    fwd = jax.jit(functools.partial(attention_forward, num_heads=H))
    out, weights = fwd(hidden_states, kparams)
    out = jax.block_until_ready(out)
    weights = jax.block_until_ready(weights)

    ref_out, ref_w = attention_reference(hidden_states, params, H)
    assert out.shape == (B, S, E)
    assert weights.shape == (B, H, S, S)
    assert jnp.allclose(out, ref_out, atol=1e-4, rtol=1e-4)
    assert jnp.allclose(weights, ref_w, atol=1e-5, rtol=1e-5)

    print("KERNEL_OK")
</pallas_src>

<mosaic_0001>
module attributes {stable_mosaic.version = 11 : i64} {
  func.func @_linear_kernel(%arg0: i32, %arg1: i32, %arg2: i32, %arg3: memref<16x32xf32, #tpu.memory_space<vmem>>, %arg4: memref<32x32xf32, #tpu.memory_space<vmem>>, %arg5: memref<1x32xf32, #tpu.memory_space<vmem>>, %arg6: memref<16x32xf32, #tpu.memory_space<vmem>>, %arg7: memref<16x32xf32, #tpu.memory_space<vmem>>) attributes {dimension_semantics = [#tpu.dimension_semantics<parallel>, #tpu.dimension_semantics<parallel>, #tpu.dimension_semantics<arbitrary>], iteration_bounds = array<i64: 1, 1, 1>, scalar_prefetch = 0 : i64, scratch_operands = 1 : i64, tpu.core_type = #tpu.core_type<tc>, window_params = [{transform_indices = @transform_0, window_bounds = array<i64: 16, 32>}, {transform_indices = @transform_1, window_bounds = array<i64: 32, 32>}, {transform_indices = @transform_2, window_bounds = array<i64: 1, 32>}, {transform_indices = @transform_3, window_bounds = array<i64: 16, 32>}]} {
    %c0_i32 = arith.constant 0 : i32
    %0 = arith.cmpi eq, %arg2, %c0_i32 : i32
    %1 = arith.extui %0 : i1 to i32
    %c0_i32_0 = arith.constant 0 : i32
    %2 = arith.cmpi ne, %1, %c0_i32_0 : i32
    scf.if %2 {
      %cst_10 = arith.constant 0.000000e+00 : f32
      %12 = vector.broadcast %cst_10 : f32 to vector<16x32xf32>
      %c0_11 = arith.constant 0 : index
      %c0_12 = arith.constant 0 : index
      %13 = vector.load %arg7[%c0_11, %c0_12] : memref<16x32xf32, #tpu.memory_space<vmem>>, vector<16x32xf32>
      tpu.vector_store %arg7[%c0_11, %c0_12], %12 {strides = array<i32>} : memref<16x32xf32, #tpu.memory_space<vmem>>, vector<16x32xf32>,
    } else {
    }
    %c0 = arith.constant 0 : index
    %c0_1 = arith.constant 0 : index
    %3 = vector.load %arg7[%c0, %c0_1] : memref<16x32xf32, #tpu.memory_space<vmem>>, vector<16x32xf32>
    %c0_2 = arith.constant 0 : index
    %c0_3 = arith.constant 0 : index
    %4 = vector.load %arg3[%c0_2, %c0_3] : memref<16x32xf32, #tpu.memory_space<vmem>>, vector<16x32xf32>
    %c0_4 = arith.constant 0 : index
    %c0_5 = arith.constant 0 : index
    %5 = vector.load %arg4[%c0_4, %c0_5] : memref<32x32xf32, #tpu.memory_space<vmem>>, vector<32x32xf32>
    %cst = arith.constant dense<0.000000e+00> : vector<16x32xf32>
    %6 = tpu.matmul %4, %5, %cst {dimension_numbers = #tpu.dot_dimension_numbers<[1], [0], [0], [1], [0, 0, 1, 1], [], []>} : vector<16x32xf32>, vector<32x32xf32>, vector<16x32xf32> -> vector<16x32xf32>
    %7 = arith.addf %3, %6 : vector<16x32xf32>
    %c0_6 = arith.constant 0 : index
    %c0_7 = arith.constant 0 : index
    %8 = vector.load %arg7[%c0_6, %c0_7] : memref<16x32xf32, #tpu.memory_space<vmem>>, vector<16x32xf32>
    tpu.vector_store %arg7[%c0_6, %c0_7], %7 {strides = array<i32>} : memref<16x32xf32, #tpu.memory_space<vmem>>, vector<16x32xf32>,
    %c0_i32_8 = arith.constant 0 : i32
    %9 = arith.cmpi eq, %arg2, %c0_i32_8 : i32
    %10 = arith.extui %9 : i1 to i32
    %c0_i32_9 = arith.constant 0 : i32
    %11 = arith.cmpi ne, %10, %c0_i32_9 : i32
    scf.if %11 {
      %c0_10 = arith.constant 0 : index
      %c0_11 = arith.constant 0 : index
      %12 = vector.load %arg7[%c0_10, %c0_11] : memref<16x32xf32, #tpu.memory_space<vmem>>, vector<16x32xf32>
      %c0_12 = arith.constant 0 : index
      %c0_13 = arith.constant 0 : index
      %13 = vector.load %arg5[%c0_12, %c0_13] : memref<1x32xf32, #tpu.memory_space<vmem>>, vector<1x32xf32>
      %14 = vector.broadcast %13 : vector<1x32xf32> to vector<16x32xf32>
      %15 = arith.addf %12, %14 : vector<16x32xf32>
      %c0_14 = arith.constant 0 : index
      %c0_15 = arith.constant 0 : index
      %16 = vector.load %arg6[%c0_14, %c0_15] : memref<16x32xf32, #tpu.memory_space<vmem>>, vector<16x32xf32>
      tpu.vector_store %arg6[%c0_14, %c0_15], %15 {strides = array<i32>} : memref<16x32xf32, #tpu.memory_space<vmem>>, vector<16x32xf32>,
    } else {
    }
    return
  }
  func.func @transform_0(%arg0: i32, %arg1: i32, %arg2: i32) -> (i32, i32) {
    %c0_i32 = arith.constant 0 : i32
    return %arg0, %arg2 : i32, i32
  }
  func.func @transform_1(%arg0: i32, %arg1: i32, %arg2: i32) -> (i32, i32) {
    %c0_i32 = arith.constant 0 : i32
    return %arg2, %arg1 : i32, i32
  }
  func.func @transform_2(%arg0: i32, %arg1: i32, %arg2: i32) -> (i32, i32) {
    %c0_i32 = arith.constant 0 : i32
    %c0_i32_0 = arith.constant 0 : i32
    return %c0_i32, %arg1 : i32, i32
  }
  func.func @transform_3(%arg0: i32, %arg1: i32, %arg2: i32) -> (i32, i32) {
    %c0_i32 = arith.constant 0 : i32
    return %arg0, %arg1 : i32, i32
  }
}

module attributes {stable_mosaic.version = 11 : i64} {
  func.func @_attn_kernel(%arg0: i32, %arg1: memref<1x8x3x4x8xf32, #tpu.memory_space<vmem>>, %arg2: memref<1x8x32xf32, #tpu.memory_space<vmem>>, %arg3: memref<1x4x8x8xf32, #tpu.memory_space<vmem>>) attributes {dimension_semantics = [#tpu.dimension_semantics<parallel>], iteration_bounds = array<i64: 2>, scalar_prefetch = 0 : i64, scratch_operands = 0 : i64, tpu.core_type = #tpu.core_type<tc>, window_params = [{transform_indices = @transform_0, window_bounds = array<i64: 1, 8, 3, 4, 8>}, {transform_indices = @transform_1, window_bounds = array<i64: 1, 8, 32>}, {transform_indices = @transform_2, window_bounds = array<i64: 1, 4, 8, 8>}]} {
    %c0 = arith.constant 0 : index
    %c0_0 = arith.constant 0 : index
    %c0_1 = arith.constant 0 : index
    %c0_2 = arith.constant 0 : index
    %c0_3 = arith.constant 0 : index
    %0 = vector.load %arg1[%c0, %c0_0, %c0_1, %c0_2, %c0_3] : memref<1x8x3x4x8xf32, #tpu.memory_space<vmem>>, vector<1x8x3x4x8xf32>
    %1 = vector.extract_strided_slice %0 {offsets = [0, 0, 0, 0, 0], sizes = [1, 8, 1, 4, 8], strides = [1, 1, 1, 1, 1]} : vector<1x8x3x4x8xf32> to vector<1x8x1x4x8xf32>
    %2 = vector.shape_cast %1 : vector<1x8x1x4x8xf32> to vector<8x4x8xf32>
    %cst = arith.constant 0.353553385 : f32
    %3 = vector.broadcast %cst : f32 to vector<8x4x8xf32>
    %4 = arith.mulf %2, %3 : vector<8x4x8xf32>
    %5 = vector.extract_strided_slice %0 {offsets = [0, 0, 1, 0, 0], sizes = [1, 8, 1, 4, 8], strides = [1, 1, 1, 1, 1]} : vector<1x8x3x4x8xf32> to vector<1x8x1x4x8xf32>
    %6 = vector.shape_cast %5 : vector<1x8x1x4x8xf32> to vector<8x4x8xf32>
    %7 = vector.extract_strided_slice %0 {offsets = [0, 0, 2, 0, 0], sizes = [1, 8, 1, 4, 8], strides = [1, 1, 1, 1, 1]} : vector<1x8x3x4x8xf32> to vector<1x8x1x4x8xf32>
    %8 = vector.shape_cast %7 : vector<1x8x1x4x8xf32> to vector<8x4x8xf32>
    %cst_4 = arith.constant dense<0.000000e+00> : vector<4x8x8xf32>
    %9 = tpu.matmul %4, %6, %cst_4 {dimension_numbers = #tpu.dot_dimension_numbers<[2], [2], [0], [0], [0, 1, 0, 0, 1, 0], [1], [1]>} : vector<8x4x8xf32>, vector<8x4x8xf32>, vector<4x8x8xf32> -> vector<4x8x8xf32>
    %cst_5 = arith.constant dense<0xFF800000> : vector<4x8xf32>
    %10 = vector.multi_reduction <maximumf>, %9, %cst_5 [2] : vector<4x8x8xf32> to vector<4x8xf32>
    %11 = vector.shape_cast %10 : vector<4x8xf32> to vector<4x8x1xf32>
    %12 = vector.broadcast %11 : vector<4x8x1xf32> to vector<4x8x8xf32>
    %13 = arith.subf %9, %12 : vector<4x8x8xf32>
    %14 = math.exp %13 : vector<4x8x8xf32>
    %cst_6 = arith.constant dense<0.000000e+00> : vector<4x8xf32>
    %15 = vector.multi_reduction <add>, %14, %cst_6 [2] : vector<4x8x8xf32> to vector<4x8xf32>
    %16 = vector.shape_cast %15 : vector<4x8xf32> to vector<4x8x1xf32>
    %17 = tpu.reciprocal %16 : vector<4x8x1xf32> -> vector<4x8x1xf32>
    %18 = vector.broadcast %17 : vector<4x8x1xf32> to vector<4x8x8xf32>
    %19 = arith.mulf %14, %18 : vector<4x8x8xf32>
    %c0_7 = arith.constant 0 : index
    %c0_8 = arith.constant 0 : index
    %c0_9 = arith.constant 0 : index
    %c0_10 = arith.constant 0 : index
    %20 = vector.load %arg3[%c0_7, %c0_8, %c0_9, %c0_10] : memref<1x4x8x8xf32, #tpu.memory_space<vmem>>, vector<1x4x8x8xf32>
    %21 = vector.shape_cast %20 : vector<1x4x8x8xf32> to vector<4x8x8xf32>
    %22 = vector.shape_cast %19 : vector<4x8x8xf32> to vector<1x4x8x8xf32>
    tpu.vector_store %arg3[%c0_7, %c0_8, %c0_9, %c0_10], %22 {strides = array<i32>} : memref<1x4x8x8xf32, #tpu.memory_space<vmem>>, vector<1x4x8x8xf32>,
    %cst_11 = arith.constant dense<0.000000e+00> : vector<4x8x8xf32>
    %23 = tpu.matmul %19, %8, %cst_11 {dimension_numbers = #tpu.dot_dimension_numbers<[2], [0], [1], [2], [0, 0, 0, 1, 1, 2], [0], [1]>} : vector<4x8x8xf32>, vector<8x4x8xf32>, vector<4x8x8xf32> -> vector<4x8x8xf32>
    %24 = tpu.transpose %23, [1, 0, 2] : vector<4x8x8xf32> -> vector<8x4x8xf32>
    %25 = vector.shape_cast %24 : vector<8x4x8xf32> to vector<8x32xf32>
    %c0_12 = arith.constant 0 : index
    %c0_13 = arith.constant 0 : index
    %c0_14 = arith.constant 0 : index
    %26 = vector.load %arg2[%c0_12, %c0_13, %c0_14] : memref<1x8x32xf32, #tpu.memory_space<vmem>>, vector<1x8x32xf32>
    %27 = vector.shape_cast %26 : vector<1x8x32xf32> to vector<8x32xf32>
    %28 = vector.shape_cast %25 : vector<8x32xf32> to vector<1x8x32xf32>
    tpu.vector_store %arg2[%c0_12, %c0_13, %c0_14], %28 {strides = array<i32>} : memref<1x8x32xf32, #tpu.memory_space<vmem>>, vector<1x8x32xf32>,
    return
  }
  func.func @transform_0(%arg0: i32) -> (i32, i32, i32, i32, i32) {
    %c0_i32 = arith.constant 0 : i32
    %c0_i32_0 = arith.constant 0 : i32
    %c0_i32_1 = arith.constant 0 : i32
    %c0_i32_2 = arith.constant 0 : i32
    %c0_i32_3 = arith.constant 0 : i32
    return %arg0, %c0_i32, %c0_i32_0, %c0_i32_1, %c0_i32_2 : i32, i32, i32, i32, i32
  }
  func.func @transform_1(%arg0: i32) -> (i32, i32, i32) {
    %c0_i32 = arith.constant 0 : i32
    %c0_i32_0 = arith.constant 0 : i32
    %c0_i32_1 = arith.constant 0 : i32
    return %arg0, %c0_i32, %c0_i32_0 : i32, i32, i32
  }
  func.func @transform_2(%arg0: i32) -> (i32, i32, i32, i32) {
    %c0_i32 = arith.constant 0 : i32
    %c0_i32_0 = arith.constant 0 : i32
    %c0_i32_1 = arith.constant 0 : i32
    %c0_i32_2 = arith.constant 0 : i32
    return %arg0, %c0_i32, %c0_i32_0, %c0_i32_1 : i32, i32, i32, i32
  }
}

module attributes {stable_mosaic.version = 11 : i64} {
  func.func @_linear_kernel(%arg0: i32, %arg1: i32, %arg2: i32, %arg3: memref<16x32xf32, #tpu.memory_space<vmem>>, %arg4: memref<32x96xf32, #tpu.memory_space<vmem>>, %arg5: memref<1x96xf32, #tpu.memory_space<vmem>>, %arg6: memref<16x96xf32, #tpu.memory_space<vmem>>, %arg7: memref<16x96xf32, #tpu.memory_space<vmem>>) attributes {dimension_semantics = [#tpu.dimension_semantics<parallel>, #tpu.dimension_semantics<parallel>, #tpu.dimension_semantics<arbitrary>], iteration_bounds = array<i64: 1, 1, 1>, scalar_prefetch = 0 : i64, scratch_operands = 1 : i64, tpu.core_type = #tpu.core_type<tc>, window_params = [{transform_indices = @transform_0, window_bounds = array<i64: 16, 32>}, {transform_indices = @transform_1, window_bounds = array<i64: 32, 96>}, {transform_indices = @transform_2, window_bounds = array<i64: 1, 96>}, {transform_indices = @transform_3, window_bounds = array<i64: 16, 96>}]} {
    %c0_i32 = arith.constant 0 : i32
    %0 = arith.cmpi eq, %arg2, %c0_i32 : i32
    %1 = arith.extui %0 : i1 to i32
    %c0_i32_0 = arith.constant 0 : i32
    %2 = arith.cmpi ne, %1, %c0_i32_0 : i32
    scf.if %2 {
      %cst_10 = arith.constant 0.000000e+00 : f32
      %12 = vector.broadcast %cst_10 : f32 to vector<16x96xf32>
      %c0_11 = arith.constant 0 : index
      %c0_12 = arith.constant 0 : index
      %13 = vector.load %arg7[%c0_11, %c0_12] : memref<16x96xf32, #tpu.memory_space<vmem>>, vector<16x96xf32>
      tpu.vector_store %arg7[%c0_11, %c0_12], %12 {strides = array<i32>} : memref<16x96xf32, #tpu.memory_space<vmem>>, vector<16x96xf32>,
    } else {
    }
    %c0 = arith.constant 0 : index
    %c0_1 = arith.constant 0 : index
    %3 = vector.load %arg7[%c0, %c0_1] : memref<16x96xf32, #tpu.memory_space<vmem>>, vector<16x96xf32>
    %c0_2 = arith.constant 0 : index
    %c0_3 = arith.constant 0 : index
    %4 = vector.load %arg3[%c0_2, %c0_3] : memref<16x32xf32, #tpu.memory_space<vmem>>, vector<16x32xf32>
    %c0_4 = arith.constant 0 : index
    %c0_5 = arith.constant 0 : index
    %5 = vector.load %arg4[%c0_4, %c0_5] : memref<32x96xf32, #tpu.memory_space<vmem>>, vector<32x96xf32>
    %cst = arith.constant dense<0.000000e+00> : vector<16x96xf32>
    %6 = tpu.matmul %4, %5, %cst {dimension_numbers = #tpu.dot_dimension_numbers<[1], [0], [0], [1], [0, 0, 1, 1], [], []>} : vector<16x32xf32>, vector<32x96xf32>, vector<16x96xf32> -> vector<16x96xf32>
    %7 = arith.addf %3, %6 : vector<16x96xf32>
    %c0_6 = arith.constant 0 : index
    %c0_7 = arith.constant 0 : index
    %8 = vector.load %arg7[%c0_6, %c0_7] : memref<16x96xf32, #tpu.memory_space<vmem>>, vector<16x96xf32>
    tpu.vector_store %arg7[%c0_6, %c0_7], %7 {strides = array<i32>} : memref<16x96xf32, #tpu.memory_space<vmem>>, vector<16x96xf32>,
    %c0_i32_8 = arith.constant 0 : i32
    %9 = arith.cmpi eq, %arg2, %c0_i32_8 : i32
    %10 = arith.extui %9 : i1 to i32
    %c0_i32_9 = arith.constant 0 : i32
    %11 = arith.cmpi ne, %10, %c0_i32_9 : i32
    scf.if %11 {
      %c0_10 = arith.constant 0 : index
      %c0_11 = arith.constant 0 : index
      %12 = vector.load %arg7[%c0_10, %c0_11] : memref<16x96xf32, #tpu.memory_space<vmem>>, vector<16x96xf32>
      %c0_12 = arith.constant 0 : index
      %c0_13 = arith.constant 0 : index
      %13 = vector.load %arg5[%c0_12, %c0_13] : memref<1x96xf32, #tpu.memory_space<vmem>>, vector<1x96xf32>
      %14 = vector.broadcast %13 : vector<1x96xf32> to vector<16x96xf32>
      %15 = arith.addf %12, %14 : vector<16x96xf32>
      %c0_14 = arith.constant 0 : index
      %c0_15 = arith.constant 0 : index
      %16 = vector.load %arg6[%c0_14, %c0_15] : memref<16x96xf32, #tpu.memory_space<vmem>>, vector<16x96xf32>
      tpu.vector_store %arg6[%c0_14, %c0_15], %15 {strides = array<i32>} : memref<16x96xf32, #tpu.memory_space<vmem>>, vector<16x96xf32>,
    } else {
    }
    return
  }
  func.func @transform_0(%arg0: i32, %arg1: i32, %arg2: i32) -> (i32, i32) {
    %c0_i32 = arith.constant 0 : i32
    return %arg0, %arg2 : i32, i32
  }
  func.func @transform_1(%arg0: i32, %arg1: i32, %arg2: i32) -> (i32, i32) {
    %c0_i32 = arith.constant 0 : i32
    return %arg2, %arg1 : i32, i32
  }
  func.func @transform_2(%arg0: i32, %arg1: i32, %arg2: i32) -> (i32, i32) {
    %c0_i32 = arith.constant 0 : i32
    %c0_i32_0 = arith.constant 0 : i32
    return %c0_i32, %arg1 : i32, i32
  }
  func.func @transform_3(%arg0: i32, %arg1: i32, %arg2: i32) -> (i32, i32) {
    %c0_i32 = arith.constant 0 : i32
    return %arg0, %arg1 : i32, i32
  }
}

</mosaic_0001>

<llo_original>
// kernel: attention_forward.5
$region0: #{attention_forward.5}
  #allocation0 [shape = 'u32[]', space=smem, size = 0x4, offset = 0x4, fixed_abs, tag = 'smem constant byte address 0x4 - core index']
  #allocation1 [shape = 'u32[144,128]{1,0:T(1,128)}', space=vmem, size = 0x12000, scoped, tag = 'internal scratch']
  #allocation2 [shape = 'f32[16,32]{1,0:T(8,128)}', space=vmem, size = 0x2000, scoped, tag = 'scratch operand']
  %s0 = inlined_call_operand.vmem [shape: f32[16,32], index: 0, kind: input, shape index: {}]
  %s1 = inlined_call_operand.vmem [shape: f32[32,32], index: 1, kind: input, shape index: {}]
  %s2 = inlined_call_operand.vmem [shape: f32[1,32], index: 2, kind: input, shape index: {}]
  %s3 = inlined_call_operand.hbm [shape: f32[16,32], index: 3, kind: output, shape index: {}]
  %s4 = sld [smem:[#allocation0]]
  $region30: #{attention_forward.5} parent=0
    _
  %s6 = ssub.s32 1, %s4
  %s7 = scalar_select 0, %s6, %s4
  $region1: #{attention_forward.5} parent=0
    #allocation3 [shape = 'u8[8192]{0}', space=vmem, size = 0x2000, scoped, tag = 'output window, operand 0, single buffered']
    #allocation4 [shape = 's32[1]{0}', space=sflag, size = 0x4, scoped, tag = 'scoped memory for attention_forward.5']
    %8 = vsyncpa [#allocation4], 0
    // Predicated region
    $region2: #{attention_forward.5} parent=1 // pred_check
      _
    $region3: #{attention_forward.5} parent=1 // pred_check_branch
      %10 = sbr.rel (0) target = $region5
    $region4: #{attention_forward.5} parent=1 // pred_region
      _
    $region5: #{attention_forward.5} parent=1 // pred_fallthru
      _
    // Predicated region
    $region6: #{attention_forward.5} parent=1 // pred_check
      _
    $region7: #{attention_forward.5} parent=1 // pred_check_branch
      %12 = sbr.rel (0) target = $region9
    $region8: #{attention_forward.5} parent=1 // pred_region
      _
    $region9: #{attention_forward.5} parent=1 // pred_fallthru
      _
    // Predicated region
    $region10: #{attention_forward.5} parent=1 // pred_check
      _
    $region11: #{attention_forward.5} parent=1 // pred_check_branch
      %14 = sbr.rel (0) target = $region13
    $region12: #{attention_forward.5} parent=1 // pred_region
      _
    $region13: #{attention_forward.5} parent=1 // pred_fallthru
      _
    %p15 = scmp.eq.s32.totalorder 0, 0
    // Predicated region
    $region14: #{attention_forward.5} parent=1 // pred_check
      %p16 = pneg %p15
    $region15: #{attention_forward.5} parent=1 // pred_check_branch
      %18 = sbr.rel (%p16) target = $region17
    $region16: #{attention_forward.5} parent=1 // pred_region
      %vm19 = vcmask 261120
      %20 = vst.msk [vmem:[#allocation2] sm:$0xff] %vm19, 0.0
      %21 = vst.msk [vmem:[#allocation2 + $0x8] sm:$0xff] %vm19, 0.0
    $region17: #{attention_forward.5} parent=1 // pred_fallthru
      _
    %v22 = vld [vmem:[#allocation2] sm:$0xff]
    %v23 = vld [vmem:[#allocation2 + $0x8] sm:$0xff]
    %v24 = vld [vmem:[%s0] sm:$0xff]
    %v25 = vld [vmem:[%s0 + $0x8] sm:$0xff]
    %v26 = vld [vmem:[%s1] sm:$0xff]
    %v27 = vld [vmem:[%s1 + $0x8] sm:$0xff]
    %v28 = vld [vmem:[%s1 + $0x10] sm:$0xff]
    %v29 = vld [vmem:[%s1 + $0x18] sm:$0xff]
    %vm30 = vcmask 261120
    %v32 = vsel %vm30, %v24, 0
    %v35 = vsel %vm30, %v25, 0
    %37 = vmatprep.subr.mxu0 0.0
    %38 = vmatpush1.msra.mxu0 0.0
    %39 = vmatprep.subr.mxu0 0.0
    %40 = vmatpush1.msra.mxu0 0.0
    %41 = vmatprep.subr.mxu0 0.0
    %42 = vmatpush1.msra.mxu0 0.0
    %43 = vmatprep.subr.mxu0 0.0
    %44 = vmatpush1.msra.mxu0 0.0
    %45 = vmatprep.subr.mxu0 0.0
    %46 = vmatpush1.msra.mxu0 0.0
    %47 = vmatprep.subr.mxu0 0.0
    %48 = vmatpush1.msra.mxu0 0.0
    %49 = vmatprep.subr.mxu0 0.0
    %50 = vmatpush1.msra.mxu0 0.0
    %51 = vmatprep.subr.mxu0 0.0
    %52 = vmatpush1.msra.mxu0 0.0
    %53 = vmatprep.subr.mxu0 0.0
    %54 = vmatpush1.msra.mxu0 0.0
    %55 = vmatprep.subr.mxu0 0.0
    %56 = vmatpush1.msra.mxu0 0.0
    %57 = vmatprep.subr.mxu0 0.0
    %58 = vmatpush1.msra.mxu0 0.0
    %59 = vmatprep.subr.mxu0 0.0
    %60 = vmatpush1.msra.mxu0 0.0
    %61 = vmatprep.subr.mxu0 0.0
    %62 = vmatpush1.msra.mxu0 %v29
    %63 = vmatprep.subr.mxu0 0.0
    %64 = vmatpush1.msra.mxu0 %v28
    %65 = vmatprep.subr.mxu0 0.0
    %66 = vmatpush1.msra.mxu0 %v27
    %67 = vmatprep.subr.mxu0 0.0
    %68 = vmatpush1.msra.mxu0 %v26
    %69 = vmatprep.subr.mxu0 0.0
    %70 = vmatpush2.msra.mxu0 0.0
    %71 = vmatprep.subr.mxu0 0.0
    %72 = vmatpush2.msra.mxu0 0.0
    %73 = vmatprep.subr.mxu0 0.0
    %74 = vmatpush2.msra.mxu0 0.0
    %75 = vmatprep.subr.mxu0 0.0
    %76 = vmatpush2.msra.mxu0 0.0
    %77 = vmatprep.subr.mxu0 0.0
    %78 = vmatpush2.msra.mxu0 0.0
    %79 = vmatprep.subr.mxu0 0.0
    %80 = vmatpush2.msra.mxu0 0.0
    %81 = vmatprep.subr.mxu0 0.0
    %82 = vmatpush2.msra.mxu0 0.0
    %83 = vmatprep.subr.mxu0 0.0
    %84 = vmatpush2.msra.mxu0 0.0
    %85 = vmatprep.subr.mxu0 0.0
    %86 = vmatpush2.msra.mxu0 0.0
    %87 = vmatprep.subr.mxu0 0.0
    %88 = vmatpush2.msra.mxu0 0.0
    %89 = vmatprep.subr.mxu0 0.0
    %90 = vmatpush2.msra.mxu0 0.0
    %91 = vmatprep.subr.mxu0 0.0
    %92 = vmatpush2.msra.mxu0 0.0
    %93 = vmatprep.subr.mxu0 0.0
    %94 = vmatpush2.msra.mxu0 0.0
    %95 = vmatprep.subr.mxu0 0.0
    %96 = vmatpush2.msra.mxu0 0.0
    %97 = vmatprep.subr.mxu0 0.0
    %98 = vmatpush2.msra.mxu0 0.0
    %99 = vmatprep.subr.mxu0 0.0
    %100 = vmatpush2.msra.mxu0 0.0
    %101 = vmatprep.mubr.f32.mxu0 0.0
    %102 = vmatmul.mubr.f32.gmra.mxu0 %v32
    %v103 = vpop.f32.mrf.mxu0
    %v104 = vadd.f32 0.0, %v103
    %v105 = vpop.f32.mrf.mxu0
    %106 = vmatprep.mubr.f32.mxu0 0.0
    %107 = vmatmul.mubr.f32.gmra.mxu0 %v35
    %v108 = vpop.f32.mrf.mxu0
    %v109 = vadd.f32 0.0, %v108
    %v110 = vpop.f32.mrf.mxu0
    %111 = vdwg.mxu0
    %v112 = vadd.f32 %v22, %v104
    %v113 = vadd.f32 %v23, %v109
    %114 = vst.msk [vmem:[#allocation2] sm:$0xff] %vm30, %v112
    %115 = vst.msk [vmem:[#allocation2 + $0x8] sm:$0xff] %vm30, %v113
    // Predicated region
    $region18: #{attention_forward.5} parent=1 // pred_check
      %p116 = pneg %p15
    $region19: #{attention_forward.5} parent=1 // pred_check_branch
      %118 = sbr.rel (%p116) target = $region21
    $region20: #{attention_forward.5} parent=1 // pred_region
      %v119 = vld [vmem:[#allocation2] sm:$0xff]
      %v120 = vld [vmem:[#allocation2 + $0x8] sm:$0xff]
      %v121 = vld [vmem:[%s2] sm:$0x1]
      %v123 = vlaneseq
      %v124 = vshrl.u32 %v123, 7
      %v125 = vsub.s32 0, %v124
      %v126 = vrot.slane %v121, %v125
      %v128 = vadd.f32 %v119, %v126
      %v129 = vadd.f32 %v120, %v126
      %130 = vst.msk [vmem:[#allocation3] sm:$0xff] %vm30, %v128
      %131 = vst.msk [vmem:[#allocation3 + $0x8] sm:$0xff] %vm30, %v129
    $region21: #{attention_forward.5} parent=1 // pred_fallthru
      _
    // Predicated region
    $region22: #{attention_forward.5} parent=1 // pred_check
      _
    $region23: #{attention_forward.5} parent=1 // pred_check_branch
      %133 = sbr.rel (0) target = $region25
    $region24: #{attention_forward.5} parent=1 // pred_region
      %s135 = ssub.s32 256, 256
      %136 = vsyncadd [#allocation4], %s135
      %s137 = sshll.u32 [#allocation3], 4
      %s138 = int_to_ptr.vmem [resolvable:$true] %s137
      %143 = dma.vmem_to_hbm [thread:$0]  %s138, 256, %s3, [#allocation4], 128, 128, 8
    $region25: #{attention_forward.5} parent=1 // pred_fallthru
      _
    // Predicated region
    $region26: #{attention_forward.5} parent=1 // pred_check
      _
    $region27: #{attention_forward.5} parent=1 // pred_check_branch
      %145 = sbr.rel (0) target = $region29
    $region28: #{attention_forward.5} parent=1 // pred_region
      %146 = dma.done [#allocation4], 256
    $region29: #{attention_forward.5} parent=1 // pred_fallthru
      _
    %147 = vsyncpa [#allocation4], 1

// kernel: attention_forward.3
$region0: #{attention_forward.3}
  #allocation0 [shape = 'u32[]', space=smem, size = 0x4, offset = 0x4, fixed_abs, tag = 'smem constant byte address 0x4 - core index']
  #allocation1 [shape = 'u32[144,128]{1,0:T(1,128)}', space=vmem, size = 0x12000, scoped, tag = 'internal scratch']
  #allocation2 [shape = 'f32[16,96]{1,0:T(8,128)}', space=vmem, size = 0x2000, scoped, tag = 'scratch operand']
  %s0 = inlined_call_operand.hbm [shape: f32[16,32], index: 0, kind: input, shape index: {}]
  %s1 = inlined_call_operand.hbm [shape: f32[32,96], index: 1, kind: input, shape index: {}]
  %s2 = inlined_call_operand.vmem [shape: f32[1,96], index: 2, kind: input, shape index: {}]
  %s3 = inlined_call_operand.vmem [shape: f32[16,96], index: 3, kind: output, shape index: {}]
  %s4 = sld [smem:[#allocation0]]
  $region38: #{attention_forward.3} parent=0
    _
  %s6 = ssub.s32 1, %s4
  %s7 = scalar_select 0, %s6, %s4
  $region1: #{attention_forward.3} parent=0
    #allocation3 [shape = 'u8[8192]{0}', space=vmem, size = 0x2000, scoped, tag = 'input window, operand 0, single buffered']
    #allocation4 [shape = 's32[1]{0}', space=sflag, size = 0x4, scoped, tag = 'scoped memory for attention_forward.3']
    #allocation5 [shape = 'u8[16384]{0}', space=vmem, size = 0x4000, scoped, tag = 'input window, operand 1, single buffered']
    #allocation6 [shape = 's32[1]{0}', space=sflag, size = 0x4, scoped, tag = 'scoped memory for attention_forward.3']
    %8 = vsyncpa [#allocation4], 0
    %9 = vsyncpa [#allocation6], 0
    // Predicated region
    $region2: #{attention_forward.3} parent=1 // pred_check
      _
    $region3: #{attention_forward.3} parent=1 // pred_check_branch
      %11 = sbr.rel (0) target = $region5
    $region4: #{attention_forward.3} parent=1 // pred_region
      %s13 = ssub.s32 256, 256
      %14 = vsyncadd [#allocation4], %s13
      %s15 = sshll.u32 [#allocation3], 4
      %s16 = int_to_ptr.vmem [resolvable:$true] %s15
      %21 = dma.hbm_to_vmem [thread:$0]  %s0, 256, %s16, [#allocation4], 128, 128, 8
    $region5: #{attention_forward.3} parent=1 // pred_fallthru
      _
    // Predicated region
    $region6: #{attention_forward.3} parent=1 // pred_check
      _
    $region7: #{attention_forward.3} parent=1 // pred_check_branch
      %23 = sbr.rel (0) target = $region9
    $region8: #{attention_forward.3} parent=1 // pred_region
      %s25 = ssub.s32 512, 512
      %26 = vsyncadd [#allocation6], %s25
      %s27 = sshll.u32 [#allocation5], 4
      %s28 = int_to_ptr.vmem [resolvable:$true] %s27
      %33 = dma.hbm_to_vmem [thread:$0]  %s1, 512, %s28, [#allocation6], 128, 128, 8
    $region9: #{attention_forward.3} parent=1 // pred_fallthru
      _
    // Predicated region
    $region10: #{attention_forward.3} parent=1 // pred_check
      _
    $region11: #{attention_forward.3} parent=1 // pred_check_branch
      %35 = sbr.rel (0) target = $region13
    $region12: #{attention_forward.3} parent=1 // pred_region
      _
    $region13: #{attention_forward.3} parent=1 // pred_fallthru
      _
    // Predicated region
    $region14: #{attention_forward.3} parent=1 // pred_check
      _
    $region15: #{attention_forward.3} parent=1 // pred_check_branch
      %37 = sbr.rel (0) target = $region17
    $region16: #{attention_forward.3} parent=1 // pred_region
      %38 = dma.done [#allocation4], 256
    $region17: #{attention_forward.3} parent=1 // pred_fallthru
      _
    // Predicated region
    $region18: #{attention_forward.3} parent=1 // pred_check
      _
    $region19: #{attention_forward.3} parent=1 // pred_check_branch
      %40 = sbr.rel (0) target = $region21
    $region20: #{attention_forward.3} parent=1 // pred_region
      %41 = dma.done [#allocation6], 512
    $region21: #{attention_forward.3} parent=1 // pred_fallthru
      _
    %p42 = scmp.eq.s32.totalorder 0, 0
    // Predicated region
    $region22: #{attention_forward.3} parent=1 // pred_check
      %p43 = pneg %p42
    $region23: #{attention_forward.3} parent=1 // pred_check_branch
      %45 = sbr.rel (%p43) target = $region25
    $region24: #{attention_forward.3} parent=1 // pred_region
      %vm46 = vcmask 785408
      %47 = vst.msk [vmem:[#allocation2] sm:$0xff] %vm46, 0.0
      %48 = vst.msk [vmem:[#allocation2 + $0x8] sm:$0xff] %vm46, 0.0
    $region25: #{attention_forward.3} parent=1 // pred_fallthru
      _
    %v49 = vld [vmem:[#allocation2] sm:$0xff]
    %v50 = vld [vmem:[#allocation2 + $0x8] sm:$0xff]
    %v51 = vld [vmem:[#allocation3] sm:$0xff]
    %v52 = vld [vmem:[#allocation3 + $0x8] sm:$0xff]
    %v53 = vld [vmem:[#allocation5] sm:$0xff]
    %v54 = vld [vmem:[#allocation5 + $0x8] sm:$0xff]
    %v55 = vld [vmem:[#allocation5 + $0x10] sm:$0xff]
    %v56 = vld [vmem:[#allocation5 + $0x18] sm:$0xff]
    %vm57 = vcmask 261120
    %v59 = vsel %vm57, %v51, 0
    %v62 = vsel %vm57, %v52, 0
    %64 = vmatprep.subr.mxu0 0.0
    %65 = vmatpush1.msra.mxu0 0.0
    %66 = vmatprep.subr.mxu0 0.0
    %67 = vmatpush1.msra.mxu0 0.0
    %68 = vmatprep.subr.mxu0 0.0
    %69 = vmatpush1.msra.mxu0 0.0
    %70 = vmatprep.subr.mxu0 0.0
    %71 = vmatpush1.msra.mxu0 0.0
    %72 = vmatprep.subr.mxu0 0.0
    %73 = vmatpush1.msra.mxu0 0.0
    %74 = vmatprep.subr.mxu0 0.0
    %75 = vmatpush1.msra.mxu0 0.0
    %76 = vmatprep.subr.mxu0 0.0
    %77 = vmatpush1.msra.mxu0 0.0
    %78 = vmatprep.subr.mxu0 0.0
    %79 = vmatpush1.msra.mxu0 0.0
    %80 = vmatprep.subr.mxu0 0.0
    %81 = vmatpush1.msra.mxu0 0.0
    %82 = vmatprep.subr.mxu0 0.0
    %83 = vmatpush1.msra.mxu0 0.0
    %84 = vmatprep.subr.mxu0 0.0
    %85 = vmatpush1.msra.mxu0 0.0
    %86 = vmatprep.subr.mxu0 0.0
    %87 = vmatpush1.msra.mxu0 0.0
    %88 = vmatprep.subr.mxu0 0.0
    %89 = vmatpush1.msra.mxu0 %v56
    %90 = vmatprep.subr.mxu0 0.0
    %91 = vmatpush1.msra.mxu0 %v55
    %92 = vmatprep.subr.mxu0 0.0
    %93 = vmatpush1.msra.mxu0 %v54
    %94 = vmatprep.subr.mxu0 0.0
    %95 = vmatpush1.msra.mxu0 %v53
    %96 = vmatprep.subr.mxu0 0.0
    %97 = vmatpush2.msra.mxu0 0.0
    %98 = vmatprep.subr.mxu0 0.0
    %99 = vmatpush2.msra.mxu0 0.0
    %100 = vmatprep.subr.mxu0 0.0
    %101 = vmatpush2.msra.mxu0 0.0
    %102 = vmatprep.subr.mxu0 0.0
    %103 = vmatpush2.msra.mxu0 0.0
    %104 = vmatprep.subr.mxu0 0.0
    %105 = vmatpush2.msra.mxu0 0.0
    %106 = vmatprep.subr.mxu0 0.0
    %107 = vmatpush2.msra.mxu0 0.0
    %108 = vmatprep.subr.mxu0 0.0
    %109 = vmatpush2.msra.mxu0 0.0
    %110 = vmatprep.subr.mxu0 0.0
    %111 = vmatpush2.msra.mxu0 0.0
    %112 = vmatprep.subr.mxu0 0.0
    %113 = vmatpush2.msra.mxu0 0.0
    %114 = vmatprep.subr.mxu0 0.0
    %115 = vmatpush2.msra.mxu0 0.0
    %116 = vmatprep.subr.mxu0 0.0
    %117 = vmatpush2.msra.mxu0 0.0
    %118 = vmatprep.subr.mxu0 0.0
    %119 = vmatpush2.msra.mxu0 0.0
    %120 = vmatprep.subr.mxu0 0.0
    %121 = vmatpush2.msra.mxu0 0.0
    %122 = vmatprep.subr.mxu0 0.0
    %123 = vmatpush2.msra.mxu0 0.0
    %124 = vmatprep.subr.mxu0 0.0
    %125 = vmatpush2.msra.mxu0 0.0
    %126 = vmatprep.subr.mxu0 0.0
    %127 = vmatpush2.msra.mxu0 0.0
    %128 = vmatprep.mubr.f32.mxu0 0.0
    %129 = vmatmul.mubr.f32.gmra.mxu0 %v59
    %v130 = vpop.f32.mrf.mxu0
    %v131 = vadd.f32 0.0, %v130
    %v132 = vpop.f32.mrf.mxu0
    %133 = vmatprep.mubr.f32.mxu0 0.0
    %134 = vmatmul.mubr.f32.gmra.mxu0 %v62
    %v135 = vpop.f32.mrf.mxu0
    %v136 = vadd.f32 0.0, %v135
    %v137 = vpop.f32.mrf.mxu0
    %138 = vdwg.mxu0
    %v139 = vadd.f32 %v49, %v131
    %v140 = vadd.f32 %v50, %v136
    %vm141 = vcmask 785408
    %142 = vst.msk [vmem:[#allocation2] sm:$0xff] %vm141, %v139
    %143 = vst.msk [vmem:[#allocation2 + $0x8] sm:$0xff] %vm141, %v140
    // Predicated region
    $region26: #{attention_forward.3} parent=1 // pred_check
      %p144 = pneg %p42
    $region27: #{attention_forward.3} parent=1 // pred_check_branch
      %146 = sbr.rel (%p144) target = $region29
    $region28: #{attention_forward.3} parent=1 // pred_region
      %v147 = vld [vmem:[#allocation2] sm:$0xff]
      %v148 = vld [vmem:[#allocation2 + $0x8] sm:$0xff]
      %v149 = vld [vmem:[%s2] sm:$0x1]
      %v151 = vlaneseq
      %v152 = vshrl.u32 %v151, 7
      %v153 = vsub.s32 0, %v152
      %v154 = vrot.slane %v149, %v153
      %v156 = vadd.f32 %v147, %v154
      %v157 = vadd.f32 %v148, %v154
      %158 = vst.msk [vmem:[%s3] sm:$0xff] %vm141, %v156
      %159 = vst.msk [vmem:[%s3 + $0x8] sm:$0xff] %vm141, %v157
    $region29: #{attention_forward.3} parent=1 // pred_fallthru
      _
    // Predicated region
    $region30: #{attention_forward.3} parent=1 // pred_check
      _
    $region31: #{attention_forward.3} parent=1 // pred_check_branch
      %161 = sbr.rel (0) target = $region33
    $region32: #{attention_forward.3} parent=1 // pred_region
      _
    $region33: #{attention_forward.3} parent=1 // pred_fallthru
      _
    // Predicated region
    $region34: #{attention_forward.3} parent=1 // pred_check
      _
    $region35: #{attention_forward.3} parent=1 // pred_check_branch
      %163 = sbr.rel (0) target = $region37
    $region36: #{attention_forward.3} parent=1 // pred_region
      _
    $region37: #{attention_forward.3} parent=1 // pred_fallthru
      _
    %164 = vsyncpa [#allocation4], 1
    %165 = vsyncpa [#allocation6], 1

// kernel: attention_forward.4
$region0: #{attention_forward.4}
  #allocation0 [shape = 'u32[]', space=smem, size = 0x4, offset = 0x4, fixed_abs, tag = 'smem constant byte address 0x4 - core index']
  #allocation1 [shape = 'u32[144,128]{1,0:T(1,128)}', space=vmem, size = 0x12000, scoped, tag = 'internal scratch']
  %s0 = inlined_call_operand.vmem [shape: f32[2,8,3,4,8], index: 0, kind: input, shape index: {}]
  %s1 = inlined_call_operand.vmem [shape: f32[2,8,32], index: 1, kind: output, shape index: {0}]
  %s2 = inlined_call_operand.hbm [shape: f32[2,4,8,8], index: 2, kind: output, shape index: {1}]
  %3 = xla_tuple %s1, %s2
  %s4 = sld [smem:[#allocation0]]
  $region45: #{attention_forward.4} parent=0
    _
  %s6 = ssub.s32 1, %s4
  %s7 = scalar_select 0, %s6, %s4
  $region1: #{attention_forward.4} parent=0
    #allocation2 [shape = 'u8[32768]{0}', space=vmem, size = 0x8000, scoped, tag = 'output window, operand 1']
    #allocation3 [shape = 's32[2]{0}', space=sflag, size = 0x8, scoped, tag = 'scoped memory for attention_forward.4']
    %8 = vsyncpa [#allocation3], 0
    %s9 = scalar_lea.sflag [#allocation3], 1
    %10 = vsyncpa %s9, 0
    loop: start=0, step=1, limit=4
    $region2: #{attention_forward.4} parent=1 // loop_pre_header
      _
    $region3: #{attention_forward.4} parent=1 // loop_header
      %s12 = sphi 0, %s16
      %p13 = scmp.ge.s32.totalorder %s12, 4
      %s22 = sphi 0, %s24
      %s25 = sphi 0, %s22
      %s26 = sphi 0, %s25
      %s42 = sphi 0, %s26
      %s48 = sphi 0, %s50
      %s51 = sphi 0, %s48
      %s52 = sphi 0, %s51
      %s68 = sphi 0, %s52
      %s74 = sphi 0, %s76
      %s77 = sphi 0, %s74
      %s78 = sphi 0, %s77
      %s94 = sphi 0, %s78
    $region4: #{attention_forward.4} parent=1 // loop_header_branch
      %15 = sbr.rel (%p13) target = $region8
    $region5: #{attention_forward.4} parent=1 // loop_body
      %s17 = ssub.s32 %s12, 1
      %s18 = ssub.s32 %s12, 2
      %s19 = sadd.s32 %s12, 1
      %s20 = ssub.s32 %s12, %s19
      %p21 = scmp.eq.s32.totalorder %s20, 0
      %s23 = sadd.s32 %s22, 1
      %s24 = scalar_select %p21, %s22, %s23
      %p27 = pneg %p21
      %p28 = scmp.eq.s32.totalorder %s12, 1
      %p29 = por %p27, %p28
      %p30 = scmp.ne.s32.totalorder %s22, %s25
      %p31 = scmp.eq.s32.totalorder %s12, 0
      %p32 = por %p30, %p31
      %p33 = scmp.ne.s32.totalorder %s22, %s25
      %p34 = scmp.eq.s32.totalorder %s17, 1
      %p35 = por %p33, %p34
      %p36 = scmp.ne.s32.totalorder %s25, %s26
      %p37 = scmp.eq.s32.totalorder %s17, 0
      %p38 = por %p36, %p37
      %p39 = scmp.ne.s32.totalorder %s25, %s26
      %p40 = scmp.eq.s32.totalorder %s18, 1
      %p41 = por %p39, %p40
      %p43 = scmp.ne.s32.totalorder %s26, %s42
      %p44 = scmp.eq.s32.totalorder %s18, 0
      %p45 = por %p43, %p44
      %s46 = ssub.s32 %s12, %s19
      %p47 = scmp.eq.s32.totalorder %s46, 0
      %s49 = sadd.s32 %s48, 1
      %s50 = scalar_select %p47, %s48, %s49
      %p53 = pneg %p47
      %p54 = scmp.eq.s32.totalorder %s12, 1
      %p55 = por %p53, %p54
      %p56 = scmp.ne.s32.totalorder %s48, %s51
      %p57 = scmp.eq.s32.totalorder %s12, 0
      %p58 = por %p56, %p57
      %p59 = scmp.ne.s32.totalorder %s48, %s51
      %p60 = scmp.eq.s32.totalorder %s17, 1
      %p61 = por %p59, %p60
      %p62 = scmp.ne.s32.totalorder %s51, %s52
      %p63 = scmp.eq.s32.totalorder %s17, 0
      %p64 = por %p62, %p63
      %p65 = scmp.ne.s32.totalorder %s51, %s52
      %p66 = scmp.eq.s32.totalorder %s18, 1
      %p67 = por %p65, %p66
      %p69 = scmp.ne.s32.totalorder %s52, %s68
      %p70 = scmp.eq.s32.totalorder %s18, 0
      %p71 = por %p69, %p70
      %s72 = ssub.s32 %s12, %s19
      %p73 = scmp.eq.s32.totalorder %s72, 0
      %s75 = sadd.s32 %s74, 1
      %s76 = scalar_select %p73, %s74, %s75
      %p79 = pneg %p73
      %p80 = scmp.eq.s32.totalorder %s12, 1
      %p81 = por %p79, %p80
      %p82 = scmp.ne.s32.totalorder %s74, %s77
      %p83 = scmp.eq.s32.totalorder %s12, 0
      %p84 = por %p82, %p83
      %p85 = scmp.ne.s32.totalorder %s74, %s77
      %p86 = scmp.eq.s32.totalorder %s17, 1
      %p87 = por %p85, %p86
      %p88 = scmp.ne.s32.totalorder %s77, %s78
      %p89 = scmp.eq.s32.totalorder %s17, 0
      %p90 = por %p88, %p89
      %p91 = scmp.ne.s32.totalorder %s77, %s78
      %p92 = scmp.eq.s32.totalorder %s18, 1
      %p93 = por %p91, %p92
      %p95 = scmp.ne.s32.totalorder %s78, %s94
      %p96 = scmp.eq.s32.totalorder %s18, 0
      %p97 = por %p95, %p96
      %p98 = scmp.le.s32.totalorder 1, %s12
      %p99 = scmp.lt.s32.totalorder %s12, 3
      %p100 = pnand %p98, %p99
      %p101 = pneg %p100
      // Predicated region
      $region9: #{attention_forward.4} parent=5 // pred_check
        _
      $region10: #{attention_forward.4} parent=5 // pred_check_branch
        %103 = sbr.rel (%p100) target = $region12
      $region11: #{attention_forward.4} parent=5 // pred_region
        %s104 = ssub.s32 %s12, 1
      $region12: #{attention_forward.4} parent=5 // pred_fallthru
        _
      %p105 = scmp.lt.s32.totalorder %s12, 2
      // Predicated region
      $region13: #{attention_forward.4} parent=5 // pred_check
        %p106 = pneg %p105
      $region14: #{attention_forward.4} parent=5 // pred_check_branch
        %108 = sbr.rel (%p106) target = $region16
      $region15: #{attention_forward.4} parent=5 // pred_region
        // Predicated region
        $region17: #{attention_forward.4} parent=15 // pred_check
          %p109 = pneg %p32
        $region18: #{attention_forward.4} parent=15 // pred_check_branch
          %111 = sbr.rel (%p109) target = $region20
        $region19: #{attention_forward.4} parent=15 // pred_region
          %p112 = scmp.lt.s32.totalorder %s12, 1
          %s113 = scalar_select %p112, %s12, 1
          %s114 = smul.addr %s113, 24
          %s115 = smul.addr %s114, 4
          %s116 = scalar_lea.vmem %s0, %s115
        $region20: #{attention_forward.4} parent=15 // pred_fallthru
          _
      $region16: #{attention_forward.4} parent=5 // pred_fallthru
        _
      %p117 = scmp.le.s32.totalorder 1, %s12
      %p118 = scmp.lt.s32.totalorder %s12, 3
      %p119 = pnand %p117, %p118
      %p120 = pneg %p119
      // Predicated region
      $region21: #{attention_forward.4} parent=5 // pred_check
        _
      $region22: #{attention_forward.4} parent=5 // pred_check_branch
        %122 = sbr.rel (%p119) target = $region24
      $region23: #{attention_forward.4} parent=5 // pred_region
        %s123 = ssub.s32 %s12, 1
        %p124 = scmp.lt.s32.totalorder %s17, 1
        %s125 = scalar_select %p124, %s17, 1
        %s126 = smul.addr %s125, 24
        %s127 = smul.addr %s126, 4
        %s128 = scalar_lea.vmem %s0, %s127
        %p129 = pneg %p38
        %p130 = pneg %p35
        %p131 = pneg %p64
        %p132 = pneg %p61
        %p133 = scmp.lt.s32.totalorder %s17, 1
        %s134 = scalar_select %p133, %s17, 1
        %s135 = smul.addr %s134, 8
        %s136 = scalar_lea.vmem %s1, %s135
        %p137 = pneg %p90
        %p138 = pneg %p87
        %s139 = sand.u32 %s77, 1
        %s140 = scalar_lea.sflag [#allocation3], %s139
        %s141 = sand.u32 %s77, 1
        %s142 = smul.addr %s141, 32
        %s143 = scalar_lea.vmem [#allocation2], %s142
        %p144 = scmp.lt.s32.totalorder %s17, 1
        %s145 = scalar_select %p144, %s17, 1
        %s146 = smul.addr %s145, 24
        %s147 = smul.addr %s146, 4
        %s148 = scalar_lea.vmem %s0, %s147
        %p149 = scmp.lt.s32.totalorder %s17, 1
        %s150 = scalar_select %p149, %s17, 1
        %s151 = smul.addr %s150, 8
        %s152 = scalar_lea.vmem %s1, %s151
        %v153 = vld [vmem:[%s148] sm:$0xf]
        %v154 = vld [vmem:[%s148 + $0x4] sm:$0xf]
        %v155 = vld [vmem:[%s148 + $0x8] sm:$0xf]
        %v156 = vld [vmem:[%s148 + $0xc] sm:$0xf]
        %v157 = vld [vmem:[%s148 + $0x10] sm:$0xf]
        %v158 = vld [vmem:[%s148 + $0x14] sm:$0xf]
        %v159 = vld [vmem:[%s148 + $0x18] sm:$0xf]
        %v160 = vld [vmem:[%s148 + $0x1c] sm:$0xf]
        %v161 = vld [vmem:[%s148 + $0x20] sm:$0xf]
        %v162 = vld [vmem:[%s148 + $0x24] sm:$0xf]
        %v163 = vld [vmem:[%s148 + $0x28] sm:$0xf]
        %v164 = vld [vmem:[%s148 + $0x2c] sm:$0xf]
        %v165 = vld [vmem:[%s148 + $0x30] sm:$0xf]
        %v166 = vld [vmem:[%s148 + $0x34] sm:$0xf]
        %v167 = vld [vmem:[%s148 + $0x38] sm:$0xf]
        %v168 = vld [vmem:[%s148 + $0x3c] sm:$0xf]
        %v169 = vld [vmem:[%s148 + $0x40] sm:$0xf]
        %v170 = vld [vmem:[%s148 + $0x44] sm:$0xf]
        %v171 = vld [vmem:[%s148 + $0x48] sm:$0xf]
        %v172 = vld [vmem:[%s148 + $0x4c] sm:$0xf]
        %v173 = vld [vmem:[%s148 + $0x50] sm:$0xf]
        %v174 = vld [vmem:[%s148 + $0x54] sm:$0xf]
        %v175 = vld [vmem:[%s148 + $0x58] sm:$0xf]
        %v176 = vld [vmem:[%s148 + $0x5c] sm:$0xf]
        %v177 = vmul.f32 %v153, 0.35355338
        %v178 = vmul.f32 %v156, 0.35355338
        %v179 = vmul.f32 %v159, 0.35355338
        %v180 = vmul.f32 %v162, 0.35355338
        %v181 = vmul.f32 %v165, 0.35355338
        %v182 = vmul.f32 %v168, 0.35355338
        %v183 = vmul.f32 %v171, 0.35355338
        %v184 = vmul.f32 %v174, 0.35355338
        %v185 = vcombine.low %v177, %v179
        %v187 = vunpack.c.l.s4 1983009808
        %v188 = vunpack.c.0.s8 %v187
        %v189 = vlaneseq
        %v190 = vshrl.u32 %v189, 7
        %v191 = vsub.s32 %v188, %v190
        %v192 = vrot.slane %v185, %v191
        %v193 = vcombine.low %v178, %v180
        %v195 = vunpack.c.l.s4 1983009808
        %v196 = vunpack.c.0.s8 %v195
        %v197 = vlaneseq
        %v198 = vshrl.u32 %v197, 7
        %v199 = vsub.s32 %v196, %v198
        %v200 = vrot.slane %v193, %v199
        %v201 = vcombine.low %v181, %v183
        %v203 = vunpack.c.l.s4 1983009808
        %v204 = vunpack.c.0.s8 %v203
        %v205 = vlaneseq
        %v206 = vshrl.u32 %v205, 7
        %v207 = vsub.s32 %v204, %v206
        %v208 = vrot.slane %v201, %v207
        %v209 = vcombine.low %v182, %v184
        %v211 = vunpack.c.l.s4 1983009808
        %v212 = vunpack.c.0.s8 %v211
        %v213 = vlaneseq
        %v214 = vshrl.u32 %v213, 7
        %v215 = vsub.s32 %v212, %v214
        %v216 = vrot.slane %v209, %v215
        %v217 = vcombine.low %v192, %v200
        %v218 = vcombine.high %v192, %v200
        %v220 = vunpack.c.l.s4 1934713408
        %v221 = vunpack.c.0.s8 %v220
        %v222 = vlaneseq
        %v223 = vshrl.u32 %v222, 7
        %v224 = vsub.s32 %v221, %v223
        %v225 = vrot.slane %v217, %v224
        %v227 = vunpack.c.l.s4 1934713408
        %v228 = vunpack.c.0.s8 %v227
        %v229 = vlaneseq
        %v230 = vshrl.u32 %v229, 7
        %v231 = vsub.s32 %v228, %v230
        %v232 = vrot.slane %v218, %v231
        %v233 = vcombine.low %v208, %v216
        %v234 = vcombine.high %v208, %v216
        %v236 = vunpack.c.l.s4 1934713408
        %v237 = vunpack.c.0.s8 %v236
        %v238 = vlaneseq
        %v239 = vshrl.u32 %v238, 7
        %v240 = vsub.s32 %v237, %v239
        %v241 = vrot.slane %v233, %v240
        %v243 = vunpack.c.l.s4 1934713408
        %v244 = vunpack.c.0.s8 %v243
        %v245 = vlaneseq
        %v246 = vshrl.u32 %v245, 7
        %v247 = vsub.s32 %v244, %v246
        %v248 = vrot.slane %v234, %v247
        %v249 = vcombine.low %v225, %v241
        %v250 = vcombine.high %v225, %v241
        %v251 = vcombine.low %v232, %v248
        %v252 = vcombine.high %v232, %v248
        %253 = vxpose.xlu0.b32.start [1/16] %v154, 128
        %254 = vxpose.xlu0.b32.cont [2/16] 0.0, 128
        %255 = vxpose.xlu0.b32.cont [3/16] 0.0, 128
        %256 = vxpose.xlu0.b32.cont [4/16] 0.0, 128
        %257 = vxpose.xlu0.b32.cont [5/16] 0.0, 128
        %258 = vxpose.xlu0.b32.cont [6/16] 0.0, 128
        %259 = vxpose.xlu0.b32.cont [7/16] 0.0, 128
        %260 = vxpose.xlu0.b32.cont [8/16] 0.0, 128
        %261 = vxpose.xlu0.b32.cont [9/16] 0.0, 128
        %262 = vxpose.xlu0.b32.cont [10/16] 0.0, 128
        %263 = vxpose.xlu0.b32.cont [11/16] 0.0, 128
        %264 = vxpose.xlu0.b32.cont [12/16] 0.0, 128
        %265 = vxpose.xlu0.b32.cont [13/16] 0.0, 128
        %266 = vxpose.xlu0.b32.cont [14/16] 0.0, 128
        %267 = vxpose.xlu0.b32.cont [15/16] 0.0, 128
        %268 = vxpose.xlu0.b32.end [16/16] 0.0, 128
        %v269 = vpop.trf.xlu0
        %v270 = vpop.trf.xlu0
        %v271 = vpop.trf.xlu0
        %v272 = vpop.trf.xlu0
        %v273 = vpop.trf.xlu0
        %v274 = vpop.trf.xlu0
        %v275 = vpop.trf.xlu0
        %v276 = vpop.trf.xlu0
        %v277 = vpop.trf.xlu0
        %v278 = vpop.trf.xlu0
        %v279 = vpop.trf.xlu0
        %v280 = vpop.trf.xlu0
        %v281 = vpop.trf.xlu0
        %v282 = vpop.trf.xlu0
        %v283 = vpop.trf.xlu0
        %v284 = vpop.trf.xlu0
        %285 = vxpose.xlu0.b32.start [1/16] %v157, 128
        %286 = vxpose.xlu0.b32.cont [2/16] 0.0, 128
        %287 = vxpose.xlu0.b32.cont [3/16] 0.0, 128
        %288 = vxpose.xlu0.b32.cont [4/16] 0.0, 128
        %289 = vxpose.xlu0.b32.cont [5/16] 0.0, 128
        %290 = vxpose.xlu0.b32.cont [6/16] 0.0, 128
        %291 = vxpose.xlu0.b32.cont [7/16] 0.0, 128
        %292 = vxpose.xlu0.b32.cont [8/16] 0.0, 128
        %293 = vxpose.xlu0.b32.cont [9/16] 0.0, 128
        %294 = vxpose.xlu0.b32.cont [10/16] 0.0, 128
        %295 = vxpose.xlu0.b32.cont [11/16] 0.0, 128
        %296 = vxpose.xlu0.b32.cont [12/16] 0.0, 128
        %297 = vxpose.xlu0.b32.cont [13/16] 0.0, 128
        %298 = vxpose.xlu0.b32.cont [14/16] 0.0, 128
        %299 = vxpose.xlu0.b32.cont [15/16] 0.0, 128
        %300 = vxpose.xlu0.b32.end [16/16] 0.0, 128
        %v301 = vpop.trf.xlu0
        %v302 = vpop.trf.xlu0
        %v303 = vpop.trf.xlu0
        %v304 = vpop.trf.xlu0
        %v305 = vpop.trf.xlu0
        %v306 = vpop.trf.xlu0
        %v307 = vpop.trf.xlu0
        %v308 = vpop.trf.xlu0
        %v309 = vpop.trf.xlu0
        %v310 = vpop.trf.xlu0
        %v311 = vpop.trf.xlu0
        %v312 = vpop.trf.xlu0
        %v313 = vpop.trf.xlu0
        %v314 = vpop.trf.xlu0
        %v315 = vpop.trf.xlu0
        %v316 = vpop.trf.xlu0
        %317 = vxpose.xlu0.b32.start [1/16] %v160, 128
        %318 = vxpose.xlu0.b32.cont [2/16] 0.0, 128
        %319 = vxpose.xlu0.b32.cont [3/16] 0.0, 128
        %320 = vxpose.xlu0.b32.cont [4/16] 0.0, 128
        %321 = vxpose.xlu0.b32.cont [5/16] 0.0, 128
        %322 = vxpose.xlu0.b32.cont [6/16] 0.0, 128
        %323 = vxpose.xlu0.b32.cont [7/16] 0.0, 128
        %324 = vxpose.xlu0.b32.cont [8/16] 0.0, 128
        %325 = vxpose.xlu0.b32.cont [9/16] 0.0, 128
        %326 = vxpose.xlu0.b32.cont [10/16] 0.0, 128
        %327 = vxpose.xlu0.b32.cont [11/16] 0.0, 128
        %328 = vxpose.xlu0.b32.cont [12/16] 0.0, 128
        %329 = vxpose.xlu0.b32.cont [13/16] 0.0, 128
        %330 = vxpose.xlu0.b32.cont [14/16] 0.0, 128
        %331 = vxpose.xlu0.b32.cont [15/16] 0.0, 128
        %332 = vxpose.xlu0.b32.end [16/16] 0.0, 128
        %v333 = vpop.trf.xlu0
        %v334 = vpop.trf.xlu0
        %v335 = vpop.trf.xlu0
        %v336 = vpop.trf.xlu0
        %v337 = vpop.trf.xlu0
        %v338 = vpop.trf.xlu0
        %v339 = vpop.trf.xlu0
        %v340 = vpop.trf.xlu0
        %v341 = vpop.trf.xlu0
        %v342 = vpop.trf.xlu0
        %v343 = vpop.trf.xlu0
        %v344 = vpop.trf.xlu0
        %v345 = vpop.trf.xlu0
        %v346 = vpop.trf.xlu0
        %v347 = vpop.trf.xlu0
        %v348 = vpop.trf.xlu0
        %349 = vxpose.xlu0.b32.start [1/16] %v163, 128
        %350 = vxpose.xlu0.b32.cont [2/16] 0.0, 128
        %351 = vxpose.xlu0.b32.cont [3/16] 0.0, 128
        %352 = vxpose.xlu0.b32.cont [4/16] 0.0, 128
        %353 = vxpose.xlu0.b32.cont [5/16] 0.0, 128
        %354 = vxpose.xlu0.b32.cont [6/16] 0.0, 128
        %355 = vxpose.xlu0.b32.cont [7/16] 0.0, 128
        %356 = vxpose.xlu0.b32.cont [8/16] 0.0, 128
        %357 = vxpose.xlu0.b32.cont [9/16] 0.0, 128
        %358 = vxpose.xlu0.b32.cont [10/16] 0.0, 128
        %359 = vxpose.xlu0.b32.cont [11/16] 0.0, 128
        %360 = vxpose.xlu0.b32.cont [12/16] 0.0, 128
        %361 = vxpose.xlu0.b32.cont [13/16] 0.0, 128
        %362 = vxpose.xlu0.b32.cont [14/16] 0.0, 128
        %363 = vxpose.xlu0.b32.cont [15/16] 0.0, 128
        %364 = vxpose.xlu0.b32.end [16/16] 0.0, 128
        %v365 = vpop.trf.xlu0
        %v366 = vpop.trf.xlu0
        %v367 = vpop.trf.xlu0
        %v368 = vpop.trf.xlu0
        %v369 = vpop.trf.xlu0
        %v370 = vpop.trf.xlu0
        %v371 = vpop.trf.xlu0
        %v372 = vpop.trf.xlu0
        %v373 = vpop.trf.xlu0
        %v374 = vpop.trf.xlu0
        %v375 = vpop.trf.xlu0
        %v376 = vpop.trf.xlu0
        %v377 = vpop.trf.xlu0
        %v378 = vpop.trf.xlu0
        %v379 = vpop.trf.xlu0
        %v380 = vpop.trf.xlu0
        %381 = vxpose.xlu0.b32.start [1/16] %v166, 128
        %382 = vxpose.xlu0.b32.cont [2/16] 0.0, 128
        %383 = vxpose.xlu0.b32.cont [3/16] 0.0, 128
        %384 = vxpose.xlu0.b32.cont [4/16] 0.0, 128
        %385 = vxpose.xlu0.b32.cont [5/16] 0.0, 128
        %386 = vxpose.xlu0.b32.cont [6/16] 0.0, 128
        %387 = vxpose.xlu0.b32.cont [7/16] 0.0, 128
        %388 = vxpose.xlu0.b32.cont [8/16] 0.0, 128
        %389 = vxpose.xlu0.b32.cont [9/16] 0.0, 128
        %390 = vxpose.xlu0.b32.cont [10/16] 0.0, 128
        %391 = vxpose.xlu0.b32.cont [11/16] 0.0, 128
        %392 = vxpose.xlu0.b32.cont [12/16] 0.0, 128
        %393 = vxpose.xlu0.b32.cont [13/16] 0.0, 128
        %394 = vxpose.xlu0.b32.cont [14/16] 0.0, 128
        %395 = vxpose.xlu0.b32.cont [15/16] 0.0, 128
        %396 = vxpose.xlu0.b32.end [16/16] 0.0, 128
        %v397 = vpop.trf.xlu0
        %v398 = vpop.trf.xlu0
        %v399 = vpop.trf.xlu0
        %v400 = vpop.trf.xlu0
        %v401 = vpop.trf.xlu0
        %v402 = vpop.trf.xlu0
        %v403 = vpop.trf.xlu0
        %v404 = vpop.trf.xlu0
        %v405 = vpop.trf.xlu0
        %v406 = vpop.trf.xlu0
        %v407 = vpop.trf.xlu0
        %v408 = vpop.trf.xlu0
        %v409 = vpop.trf.xlu0
        %v410 = vpop.trf.xlu0
        %v411 = vpop.trf.xlu0
        %v412 = vpop.trf.xlu0
        %413 = vxpose.xlu0.b32.start [1/16] %v169, 128
        %414 = vxpose.xlu0.b32.cont [2/16] 0.0, 128
        %415 = vxpose.xlu0.b32.cont [3/16] 0.0, 128
        %416 = vxpose.xlu0.b32.cont [4/16] 0.0, 128
        %417 = vxpose.xlu0.b32.cont [5/16] 0.0, 128
        %418 = vxpose.xlu0.b32.cont [6/16] 0.0, 128
        %419 = vxpose.xlu0.b32.cont [7/16] 0.0, 128
        %420 = vxpose.xlu0.b32.cont [8/16] 0.0, 128
        %421 = vxpose.xlu0.b32.cont [9/16] 0.0, 128
        %422 = vxpose.xlu0.b32.cont [10/16] 0.0, 128
        %423 = vxpose.xlu0.b32.cont [11/16] 0.0, 128
        %424 = vxpose.xlu0.b32.cont [12/16] 0.0, 128
        %425 = vxpose.xlu0.b32.cont [13/16] 0.0, 128
        %426 = vxpose.xlu0.b32.cont [14/16] 0.0, 128
        %427 = vxpose.xlu0.b32.cont [15/16] 0.0, 128
        %428 = vxpose.xlu0.b32.end [16/16] 0.0, 128
        %v429 = vpop.trf.xlu0
        %v430 = vpop.trf.xlu0
        %v431 = vpop.trf.xlu0
        %v432 = vpop.trf.xlu0
        %v433 = vpop.trf.xlu0
        %v434 = vpop.trf.xlu0
        %v435 = vpop.trf.xlu0
        %v436 = vpop.trf.xlu0
        %v437 = vpop.trf.xlu0
        %v438 = vpop.trf.xlu0
        %v439 = vpop.trf.xlu0
        %v440 = vpop.trf.xlu0
        %v441 = vpop.trf.xlu0
        %v442 = vpop.trf.xlu0
        %v443 = vpop.trf.xlu0
        %v444 = vpop.trf.xlu0
        %445 = vxpose.xlu0.b32.start [1/16] %v172, 128
        %446 = vxpose.xlu0.b32.cont [2/16] 0.0, 128
        %447 = vxpose.xlu0.b32.cont [3/16] 0.0, 128
        %448 = vxpose.xlu0.b32.cont [4/16] 0.0, 128
        %449 = vxpose.xlu0.b32.cont [5/16] 0.0, 128
        %450 = vxpose.xlu0.b32.cont [6/16] 0.0, 128
        %451 = vxpose.xlu0.b32.cont [7/16] 0.0, 128
        %452 = vxpose.xlu0.b32.cont [8/16] 0.0, 128
        %453 = vxpose.xlu0.b32.cont [9/16] 0.0, 128
        %454 = vxpose.xlu0.b32.cont [10/16] 0.0, 128
        %455 = vxpose.xlu0.b32.cont [11/16] 0.0, 128
        %456 = vxpose.xlu0.b32.cont [12/16] 0.0, 128
        %457 = vxpose.xlu0.b32.cont [13/16] 0.0, 128
        %458 = vxpose.xlu0.b32.cont [14/16] 0.0, 128
        %459 = vxpose.xlu0.b32.cont [15/16] 0.0, 128
        %460 = vxpose.xlu0.b32.end [16/16] 0.0, 128
        %v461 = vpop.trf.xlu0
        %v462 = vpop.trf.xlu0
        %v463 = vpop.trf.xlu0
        %v464 = vpop.trf.xlu0
        %v465 = vpop.trf.xlu0
        %v466 = vpop.trf.xlu0
        %v467 = vpop.trf.xlu0
        %v468 = vpop.trf.xlu0
        %v469 = vpop.trf.xlu0
        %v470 = vpop.trf.xlu0
        %v471 = vpop.trf.xlu0
        %v472 = vpop.trf.xlu0
        %v473 = vpop.trf.xlu0
        %v474 = vpop.trf.xlu0
        %v475 = vpop.trf.xlu0
        %v476 = vpop.trf.xlu0
        %477 = vxpose.xlu0.b32.start [1/16] %v175, 128
        %478 = vxpose.xlu0.b32.cont [2/16] 0.0, 128
        %479 = vxpose.xlu0.b32.cont [3/16] 0.0, 128
        %480 = vxpose.xlu0.b32.cont [4/16] 0.0, 128
        %481 = vxpose.xlu0.b32.cont [5/16] 0.0, 128
        %482 = vxpose.xlu0.b32.cont [6/16] 0.0, 128
        %483 = vxpose.xlu0.b32.cont [7/16] 0.0, 128
        %484 = vxpose.xlu0.b32.cont [8/16] 0.0, 128
        %485 = vxpose.xlu0.b32.cont [9/16] 0.0, 128
        %486 = vxpose.xlu0.b32.cont [10/16] 0.0, 128
        %487 = vxpose.xlu0.b32.cont [11/16] 0.0, 128
        %488 = vxpose.xlu0.b32.cont [12/16] 0.0, 128
        %489 = vxpose.xlu0.b32.cont [13/16] 0.0, 128
        %490 = vxpose.xlu0.b32.cont [14/16] 0.0, 128
        %491 = vxpose.xlu0.b32.cont [15/16] 0.0, 128
        %492 = vxpose.xlu0.b32.end [16/16] 0.0, 128
        %v493 = vpop.trf.xlu0
        %v494 = vpop.trf.xlu0
        %v495 = vpop.trf.xlu0
        %v496 = vpop.trf.xlu0
        %v497 = vpop.trf.xlu0
        %v498 = vpop.trf.xlu0
        %v499 = vpop.trf.xlu0
        %v500 = vpop.trf.xlu0
        %v501 = vpop.trf.xlu0
        %v502 = vpop.trf.xlu0
        %v503 = vpop.trf.xlu0
        %v504 = vpop.trf.xlu0
        %v505 = vpop.trf.xlu0
        %v506 = vpop.trf.xlu0
        %v507 = vpop.trf.xlu0
        %v508 = vpop.trf.xlu0
        %v509 = vcombine.low %v269, %v333
        %v510 = vcombine.high %v269, %v333
        %v512 = vunpack.c.l.s4 1983009808
        %v513 = vunpack.c.0.s8 %v512
        %v514 = vlaneseq
        %v515 = vshrl.u32 %v514, 7
        %v516 = vsub.s32 %v513, %v515
        %v517 = vrot.slane %v509, %v516
        %v519 = vunpack.c.l.s4 1983009808
        %v520 = vunpack.c.0.s8 %v519
        %v521 = vlaneseq
        %v522 = vshrl.u32 %v521, 7
        %v523 = vsub.s32 %v520, %v522
        %v524 = vrot.slane %v510, %v523
        %v525 = vcombine.low %v301, %v365
        %v526 = vcombine.high %v301, %v365
        %v528 = vunpack.c.l.s4 1983009808
        %v529 = vunpack.c.0.s8 %v528
        %v530 = vlaneseq
        %v531 = vshrl.u32 %v530, 7
        %v532 = vsub.s32 %v529, %v531
        %v533 = vrot.slane %v525, %v532
        %v535 = vunpack.c.l.s4 1983009808
        %v536 = vunpack.c.0.s8 %v535
        %v537 = vlaneseq
        %v538 = vshrl.u32 %v537, 7
        %v539 = vsub.s32 %v536, %v538
        %v540 = vrot.slane %v526, %v539
        %v541 = vcombine.low %v397, %v461
        %v542 = vcombine.high %v397, %v461
        %v544 = vunpack.c.l.s4 1983009808
        %v545 = vunpack.c.0.s8 %v544
        %v546 = vlaneseq
        %v547 = vshrl.u32 %v546, 7
        %v548 = vsub.s32 %v545, %v547
        %v549 = vrot.slane %v541, %v548
        %v551 = vunpack.c.l.s4 1983009808
        %v552 = vunpack.c.0.s8 %v551
        %v553 = vlaneseq
        %v554 = vshrl.u32 %v553, 7
        %v555 = vsub.s32 %v552, %v554
        %v556 = vrot.slane %v542, %v555
        %v557 = vcombine.low %v429, %v493
        %v558 = vcombine.high %v429, %v493
        %v560 = vunpack.c.l.s4 1983009808
        %v561 = vunpack.c.0.s8 %v560
        %v562 = vlaneseq
        %v563 = vshrl.u32 %v562, 7
        %v564 = vsub.s32 %v561, %v563
        %v565 = vrot.slane %v557, %v564
        %v567 = vunpack.c.l.s4 1983009808
        %v568 = vunpack.c.0.s8 %v567
        %v569 = vlaneseq
        %v570 = vshrl.u32 %v569, 7
        %v571 = vsub.s32 %v568, %v570
        %v572 = vrot.slane %v558, %v571
        %v573 = vcombine.low %v517, %v533
        %v574 = vcombine.high %v517, %v533
        %v576 = vunpack.c.l.s4 1934713408
        %v577 = vunpack.c.0.s8 %v576
        %v578 = vlaneseq
        %v579 = vshrl.u32 %v578, 7
        %v580 = vsub.s32 %v577, %v579
        %v581 = vrot.slane %v573, %v580
        %v583 = vunpack.c.l.s4 1934713408
        %v584 = vunpack.c.0.s8 %v583
        %v585 = vlaneseq
        %v586 = vshrl.u32 %v585, 7
        %v587 = vsub.s32 %v584, %v586
        %v588 = vrot.slane %v574, %v587
        %v589 = vcombine.low %v524, %v540
        %v590 = vcombine.high %v524, %v540
        %v592 = vunpack.c.l.s4 1934713408
        %v593 = vunpack.c.0.s8 %v592
        %v594 = vlaneseq
        %v595 = vshrl.u32 %v594, 7
        %v596 = vsub.s32 %v593, %v595
        %v597 = vrot.slane %v589, %v596
        %v599 = vunpack.c.l.s4 1934713408
        %v600 = vunpack.c.0.s8 %v599
        %v601 = vlaneseq
        %v602 = vshrl.u32 %v601, 7
        %v603 = vsub.s32 %v600, %v602
        %v604 = vrot.slane %v590, %v603
        %v605 = vcombine.low %v549, %v565
        %v606 = vcombine.high %v549, %v565
        %v608 = vunpack.c.l.s4 1934713408
        %v609 = vunpack.c.0.s8 %v608
        %v610 = vlaneseq
        %v611 = vshrl.u32 %v610, 7
        %v612 = vsub.s32 %v609, %v611
        %v613 = vrot.slane %v605, %v612
        %v615 = vunpack.c.l.s4 1934713408
        %v616 = vunpack.c.0.s8 %v615
        %v617 = vlaneseq
        %v618 = vshrl.u32 %v617, 7
        %v619 = vsub.s32 %v616, %v618
        %v620 = vrot.slane %v606, %v619
        %v621 = vcombine.low %v556, %v572
        %v622 = vcombine.high %v556, %v572
        %v624 = vunpack.c.l.s4 1934713408
        %v625 = vunpack.c.0.s8 %v624
        %v626 = vlaneseq
        %v627 = vshrl.u32 %v626, 7
        %v628 = vsub.s32 %v625, %v627
        %v629 = vrot.slane %v621, %v628
        %v631 = vunpack.c.l.s4 1934713408
        %v632 = vunpack.c.0.s8 %v631
        %v633 = vlaneseq
        %v634 = vshrl.u32 %v633, 7
        %v635 = vsub.s32 %v632, %v634
        %v636 = vrot.slane %v622, %v635
        %v637 = vcombine.low %v581, %v613
        %v638 = vcombine.high %v581, %v613
        %v639 = vcombine.low %v588, %v620
        %v640 = vcombine.high %v588, %v620
        %v641 = vcombine.low %v597, %v629
        %v642 = vcombine.high %v597, %v629
        %v643 = vcombine.low %v604, %v636
        %v644 = vcombine.high %v604, %v636
        %645 = vxpose.xlu0.b32.start [1/16] %v637, 128
        %646 = vxpose.xlu0.b32.cont [2/16] 0.0, 128
        %647 = vxpose.xlu0.b32.cont [3/16] 0.0, 128
        %648 = vxpose.xlu0.b32.cont [4/16] 0.0, 128
        %649 = vxpose.xlu0.b32.cont [5/16] 0.0, 128
        %650 = vxpose.xlu0.b32.cont [6/16] 0.0, 128
        %651 = vxpose.xlu0.b32.cont [7/16] 0.0, 128
        %652 = vxpose.xlu0.b32.cont [8/16] 0.0, 128
        %653 = vxpose.xlu0.b32.cont [9/16] 0.0, 128
        %654 = vxpose.xlu0.b32.cont [10/16] 0.0, 128
        %655 = vxpose.xlu0.b32.cont [11/16] 0.0, 128
        %656 = vxpose.xlu0.b32.cont [12/16] 0.0, 128
        %657 = vxpose.xlu0.b32.cont [13/16] 0.0, 128
        %658 = vxpose.xlu0.b32.cont [14/16] 0.0, 128
        %659 = vxpose.xlu0.b32.cont [15/16] 0.0, 128
        %660 = vxpose.xlu0.b32.end [16/16] 0.0, 128
        %v661 = vpop.trf.xlu0
        %v662 = vpop.trf.xlu0
        %v663 = vpop.trf.xlu0
        %v664 = vpop.trf.xlu0
        %v665 = vpop.trf.xlu0
        %v666 = vpop.trf.xlu0
        %v667 = vpop.trf.xlu0
        %v668 = vpop.trf.xlu0
        %v669 = vpop.trf.xlu0
        %v670 = vpop.trf.xlu0
        %v671 = vpop.trf.xlu0
        %v672 = vpop.trf.xlu0
        %v673 = vpop.trf.xlu0
        %v674 = vpop.trf.xlu0
        %v675 = vpop.trf.xlu0
        %v676 = vpop.trf.xlu0
        %677 = vxpose.xlu0.b32.start [1/16] %v638, 128
        %678 = vxpose.xlu0.b32.cont [2/16] 0.0, 128
        %679 = vxpose.xlu0.b32.cont [3/16] 0.0, 128
        %680 = vxpose.xlu0.b32.cont [4/16] 0.0, 128
        %681 = vxpose.xlu0.b32.cont [5/16] 0.0, 128
        %682 = vxpose.xlu0.b32.cont [6/16] 0.0, 128
        %683 = vxpose.xlu0.b32.cont [7/16] 0.0, 128
        %684 = vxpose.xlu0.b32.cont [8/16] 0.0, 128
        %685 = vxpose.xlu0.b32.cont [9/16] 0.0, 128
        %686 = vxpose.xlu0.b32.cont [10/16] 0.0, 128
        %687 = vxpose.xlu0.b32.cont [11/16] 0.0, 128
        %688 = vxpose.xlu0.b32.cont [12/16] 0.0, 128
        %689 = vxpose.xlu0.b32.cont [13/16] 0.0, 128
        %690 = vxpose.xlu0.b32.cont [14/16] 0.0, 128
        %691 = vxpose.xlu0.b32.cont [15/16] 0.0, 128
        %692 = vxpose.xlu0.b32.end [16/16] 0.0, 128
        %v693 = vpop.trf.xlu0
        %v694 = vpop.trf.xlu0
        %v695 = vpop.trf.xlu0
        %v696 = vpop.trf.xlu0
        %v697 = vpop.trf.xlu0
        %v698 = vpop.trf.xlu0
        %v699 = vpop.trf.xlu0
        %v700 = vpop.trf.xlu0
        %v701 = vpop.trf.xlu0
        %v702 = vpop.trf.xlu0
        %v703 = vpop.trf.xlu0
        %v704 = vpop.trf.xlu0
        %v705 = vpop.trf.xlu0
        %v706 = vpop.trf.xlu0
        %v707 = vpop.trf.xlu0
        %v708 = vpop.trf.xlu0
        %709 = vxpose.xlu0.b32.start [1/16] %v639, 128
        %710 = vxpose.xlu0.b32.cont [2/16] 0.0, 128
        %711 = vxpose.xlu0.b32.cont [3/16] 0.0, 128
        %712 = vxpose.xlu0.b32.cont [4/16] 0.0, 128
        %713 = vxpose.xlu0.b32.cont [5/16] 0.0, 128
        %714 = vxpose.xlu0.b32.cont [6/16] 0.0, 128
        %715 = vxpose.xlu0.b32.cont [7/16] 0.0, 128
        %716 = vxpose.xlu0.b32.cont [8/16] 0.0, 128
        %717 = vxpose.xlu0.b32.cont [9/16] 0.0, 128
        %718 = vxpose.xlu0.b32.cont [10/16] 0.0, 128
        %719 = vxpose.xlu0.b32.cont [11/16] 0.0, 128
        %720 = vxpose.xlu0.b32.cont [12/16] 0.0, 128
        %721 = vxpose.xlu0.b32.cont [13/16] 0.0, 128
        %722 = vxpose.xlu0.b32.cont [14/16] 0.0, 128
        %723 = vxpose.xlu0.b32.cont [15/16] 0.0, 128
        %724 = vxpose.xlu0.b32.end [16/16] 0.0, 128
        %v725 = vpop.trf.xlu0
        %v726 = vpop.trf.xlu0
        %v727 = vpop.trf.xlu0
        %v728 = vpop.trf.xlu0
        %v729 = vpop.trf.xlu0
        %v730 = vpop.trf.xlu0
        %v731 = vpop.trf.xlu0
        %v732 = vpop.trf.xlu0
        %v733 = vpop.trf.xlu0
        %v734 = vpop.trf.xlu0
        %v735 = vpop.trf.xlu0
        %v736 = vpop.trf.xlu0
        %v737 = vpop.trf.xlu0
        %v738 = vpop.trf.xlu0
        %v739 = vpop.trf.xlu0
        %v740 = vpop.trf.xlu0
        %741 = vxpose.xlu0.b32.start [1/16] %v640, 128
        %742 = vxpose.xlu0.b32.cont [2/16] 0.0, 128
        %743 = vxpose.xlu0.b32.cont [3/16] 0.0, 128
        %744 = vxpose.xlu0.b32.cont [4/16] 0.0, 128
        %745 = vxpose.xlu0.b32.cont [5/16] 0.0, 128
        %746 = vxpose.xlu0.b32.cont [6/16] 0.0, 128
        %747 = vxpose.xlu0.b32.cont [7/16] 0.0, 128
        %748 = vxpose.xlu0.b32.cont [8/16] 0.0, 128
        %749 = vxpose.xlu0.b32.cont [9/16] 0.0, 128
        %750 = vxpose.xlu0.b32.cont [10/16] 0.0, 128
        %751 = vxpose.xlu0.b32.cont [11/16] 0.0, 128
        %752 = vxpose.xlu0.b32.cont [12/16] 0.0, 128
        %753 = vxpose.xlu0.b32.cont [13/16] 0.0, 128
        %754 = vxpose.xlu0.b32.cont [14/16] 0.0, 128
        %755 = vxpose.xlu0.b32.cont [15/16] 0.0, 128
        %756 = vxpose.xlu0.b32.end [16/16] 0.0, 128
        %v757 = vpop.trf.xlu0
        %v758 = vpop.trf.xlu0
        %v759 = vpop.trf.xlu0
        %v760 = vpop.trf.xlu0
        %v761 = vpop.trf.xlu0
        %v762 = vpop.trf.xlu0
        %v763 = vpop.trf.xlu0
        %v764 = vpop.trf.xlu0
        %v765 = vpop.trf.xlu0
        %v766 = vpop.trf.xlu0
        %v767 = vpop.trf.xlu0
        %v768 = vpop.trf.xlu0
        %v769 = vpop.trf.xlu0
        %v770 = vpop.trf.xlu0
        %v771 = vpop.trf.xlu0
        %v772 = vpop.trf.xlu0
        %773 = vxpose.xlu0.b32.start [1/16] %v641, 128
        %774 = vxpose.xlu0.b32.cont [2/16] 0.0, 128
        %775 = vxpose.xlu0.b32.cont [3/16] 0.0, 128
        %776 = vxpose.xlu0.b32.cont [4/16] 0.0, 128
        %777 = vxpose.xlu0.b32.cont [5/16] 0.0, 128
        %778 = vxpose.xlu0.b32.cont [6/16] 0.0, 128
        %779 = vxpose.xlu0.b32.cont [7/16] 0.0, 128
        %780 = vxpose.xlu0.b32.cont [8/16] 0.0, 128
        %781 = vxpose.xlu0.b32.cont [9/16] 0.0, 128
        %782 = vxpose.xlu0.b32.cont [10/16] 0.0, 128
        %783 = vxpose.xlu0.b32.cont [11/16] 0.0, 128
        %784 = vxpose.xlu0.b32.cont [12/16] 0.0, 128
        %785 = vxpose.xlu0.b32.cont [13/16] 0.0, 128
        %786 = vxpose.xlu0.b32.cont [14/16] 0.0, 128
        %787 = vxpose.xlu0.b32.cont [15/16] 0.0, 128
        %788 = vxpose.xlu0.b32.end [16/16] 0.0, 128
        %v789 = vpop.trf.xlu0
        %v790 = vpop.trf.xlu0
        %v791 = vpop.trf.xlu0
        %v792 = vpop.trf.xlu0
        %v793 = vpop.trf.xlu0
        %v794 = vpop.trf.xlu0
        %v795 = vpop.trf.xlu0
        %v796 = vpop.trf.xlu0
        %v797 = vpop.trf.xlu0
        %v798 = vpop.trf.xlu0
        %v799 = vpop.trf.xlu0
        %v800 = vpop.trf.xlu0
        %v801 = vpop.trf.xlu0
        %v802 = vpop.trf.xlu0
        %v803 = vpop.trf.xlu0
        %v804 = vpop.trf.xlu0
        %805 = vxpose.xlu0.b32.start [1/16] %v642, 128
        %806 = vxpose.xlu0.b32.cont [2/16] 0.0, 128
        %807 = vxpose.xlu0.b32.cont [3/16] 0.0, 128
        %808 = vxpose.xlu0.b32.cont [4/16] 0.0, 128
        %809 = vxpose.xlu0.b32.cont [5/16] 0.0, 128
        %810 = vxpose.xlu0.b32.cont [6/16] 0.0, 128
        %811 = vxpose.xlu0.b32.cont [7/16] 0.0, 128
        %812 = vxpose.xlu0.b32.cont [8/16] 0.0, 128
        %813 = vxpose.xlu0.b32.cont [9/16] 0.0, 128
        %814 = vxpose.xlu0.b32.cont [10/16] 0.0, 128
        %815 = vxpose.xlu0.b32.cont [11/16] 0.0, 128
        %816 = vxpose.xlu0.b32.cont [12/16] 0.0, 128
        %817 = vxpose.xlu0.b32.cont [13/16] 0.0, 128
        %818 = vxpose.xlu0.b32.cont [14/16] 0.0, 128
        %819 = vxpose.xlu0.b32.cont [15/16] 0.0, 128
        %820 = vxpose.xlu0.b32.end [16/16] 0.0, 128
        %v821 = vpop.trf.xlu0
        %v822 = vpop.trf.xlu0
        %v823 = vpop.trf.xlu0
        %v824 = vpop.trf.xlu0
        %v825 = vpop.trf.xlu0
        %v826 = vpop.trf.xlu0
        %v827 = vpop.trf.xlu0
        %v828 = vpop.trf.xlu0
        %v829 = vpop.trf.xlu0
        %v830 = vpop.trf.xlu0
        %v831 = vpop.trf.xlu0
        %v832 = vpop.trf.xlu0
        %v833 = vpop.trf.xlu0
        %v834 = vpop.trf.xlu0
        %v835 = vpop.trf.xlu0
        %v836 = vpop.trf.xlu0
        %837 = vxpose.xlu0.b32.start [1/16] %v643, 128
        %838 = vxpose.xlu0.b32.cont [2/16] 0.0, 128
        %839 = vxpose.xlu0.b32.cont [3/16] 0.0, 128
        %840 = vxpose.xlu0.b32.cont [4/16] 0.0, 128
        %841 = vxpose.xlu0.b32.cont [5/16] 0.0, 128
        %842 = vxpose.xlu0.b32.cont [6/16] 0.0, 128
        %843 = vxpose.xlu0.b32.cont [7/16] 0.0, 128
        %844 = vxpose.xlu0.b32.cont [8/16] 0.0, 128
        %845 = vxpose.xlu0.b32.cont [9/16] 0.0, 128
        %846 = vxpose.xlu0.b32.cont [10/16] 0.0, 128
        %847 = vxpose.xlu0.b32.cont [11/16] 0.0, 128
        %848 = vxpose.xlu0.b32.cont [12/16] 0.0, 128
        %849 = vxpose.xlu0.b32.cont [13/16] 0.0, 128
        %850 = vxpose.xlu0.b32.cont [14/16] 0.0, 128
        %851 = vxpose.xlu0.b32.cont [15/16] 0.0, 128
        %852 = vxpose.xlu0.b32.end [16/16] 0.0, 128
        %v853 = vpop.trf.xlu0
        %v854 = vpop.trf.xlu0
        %v855 = vpop.trf.xlu0
        %v856 = vpop.trf.xlu0
        %v857 = vpop.trf.xlu0
        %v858 = vpop.trf.xlu0
        %v859 = vpop.trf.xlu0
        %v860 = vpop.trf.xlu0
        %v861 = vpop.trf.xlu0
        %v862 = vpop.trf.xlu0
        %v863 = vpop.trf.xlu0
        %v864 = vpop.trf.xlu0
        %v865 = vpop.trf.xlu0
        %v866 = vpop.trf.xlu0
        %v867 = vpop.trf.xlu0
        %v868 = vpop.trf.xlu0
        %869 = vxpose.xlu0.b32.start [1/16] %v644, 128
        %870 = vxpose.xlu0.b32.cont [2/16] 0.0, 128
        %871 = vxpose.xlu0.b32.cont [3/16] 0.0, 128
        %872 = vxpose.xlu0.b32.cont [4/16] 0.0, 128
        %873 = vxpose.xlu0.b32.cont [5/16] 0.0, 128
        %874 = vxpose.xlu0.b32.cont [6/16] 0.0, 128
        %875 = vxpose.xlu0.b32.cont [7/16] 0.0, 128
        %876 = vxpose.xlu0.b32.cont [8/16] 0.0, 128
        %877 = vxpose.xlu0.b32.cont [9/16] 0.0, 128
        %878 = vxpose.xlu0.b32.cont [10/16] 0.0, 128
        %879 = vxpose.xlu0.b32.cont [11/16] 0.0, 128
        %880 = vxpose.xlu0.b32.cont [12/16] 0.0, 128
        %881 = vxpose.xlu0.b32.cont [13/16] 0.0, 128
        %882 = vxpose.xlu0.b32.cont [14/16] 0.0, 128
        %883 = vxpose.xlu0.b32.cont [15/16] 0.0, 128
        %884 = vxpose.xlu0.b32.end [16/16] 0.0, 128
        %v885 = vpop.trf.xlu0
        %v886 = vpop.trf.xlu0
        %v887 = vpop.trf.xlu0
        %v888 = vpop.trf.xlu0
        %v889 = vpop.trf.xlu0
        %v890 = vpop.trf.xlu0
        %v891 = vpop.trf.xlu0
        %v892 = vpop.trf.xlu0
        %v893 = vpop.trf.xlu0
        %v894 = vpop.trf.xlu0
        %v895 = vpop.trf.xlu0
        %v896 = vpop.trf.xlu0
        %v897 = vpop.trf.xlu0
        %v898 = vpop.trf.xlu0
        %v899 = vpop.trf.xlu0
        %v900 = vpop.trf.xlu0
        %v901 = vcombine.low %v661, %v725
        %v903 = vunpack.c.l.s4 1983009808
        %v904 = vunpack.c.0.s8 %v903
        %v905 = vlaneseq
        %v906 = vshrl.u32 %v905, 7
        %v907 = vsub.s32 %v904, %v906
        %v908 = vrot.slane %v901, %v907
        %v909 = vcombine.low %v693, %v757
        %v911 = vunpack.c.l.s4 1983009808
        %v912 = vunpack.c.0.s8 %v911
        %v913 = vlaneseq
        %v914 = vshrl.u32 %v913, 7
        %v915 = vsub.s32 %v912, %v914
        %v916 = vrot.slane %v909, %v915
        %v917 = vcombine.low %v789, %v853
        %v919 = vunpack.c.l.s4 1983009808
        %v920 = vunpack.c.0.s8 %v919
        %v921 = vlaneseq
        %v922 = vshrl.u32 %v921, 7
        %v923 = vsub.s32 %v920, %v922
        %v924 = vrot.slane %v917, %v923
        %v925 = vcombine.low %v821, %v885
        %v927 = vunpack.c.l.s4 1983009808
        %v928 = vunpack.c.0.s8 %v927
        %v929 = vlaneseq
        %v930 = vshrl.u32 %v929, 7
        %v931 = vsub.s32 %v928, %v930
        %v932 = vrot.slane %v925, %v931
        %v933 = vcombine.low %v908, %v916
        %v934 = vcombine.high %v908, %v916
        %v936 = vunpack.c.l.s4 1934713408
        %v937 = vunpack.c.0.s8 %v936
        %v938 = vlaneseq
        %v939 = vshrl.u32 %v938, 7
        %v940 = vsub.s32 %v937, %v939
        %v941 = vrot.slane %v933, %v940
        %v943 = vunpack.c.l.s4 1934713408
        %v944 = vunpack.c.0.s8 %v943
        %v945 = vlaneseq
        %v946 = vshrl.u32 %v945, 7
        %v947 = vsub.s32 %v944, %v946
        %v948 = vrot.slane %v934, %v947
        %v949 = vcombine.low %v924, %v932
        %v950 = vcombine.high %v924, %v932
        %v952 = vunpack.c.l.s4 1934713408
        %v953 = vunpack.c.0.s8 %v952
        %v954 = vlaneseq
        %v955 = vshrl.u32 %v954, 7
        %v956 = vsub.s32 %v953, %v955
        %v957 = vrot.slane %v949, %v956
        %v959 = vunpack.c.l.s4 1934713408
        %v960 = vunpack.c.0.s8 %v959
        %v961 = vlaneseq
        %v962 = vshrl.u32 %v961, 7
        %v963 = vsub.s32 %v960, %v962
        %v964 = vrot.slane %v950, %v963
        %v965 = vcombine.low %v941, %v957
        %v966 = vcombine.high %v941, %v957
        %v967 = vcombine.low %v948, %v964
        %v968 = vcombine.high %v948, %v964
        %vm969 = vcmask 64512
        %v971 = vsel %vm969, %v249, 0
        %973 = vmatprep.subr.mxu0 0.0
        %974 = vmatpush1.msra.mxu0 0.0
        %975 = vmatprep.subr.mxu0 0.0
        %976 = vmatpush1.msra.mxu0 0.0
        %977 = vmatprep.subr.mxu0 0.0
        %978 = vmatpush1.msra.mxu0 0.0
        %979 = vmatprep.subr.mxu0 0.0
        %980 = vmatpush1.msra.mxu0 0.0
        %981 = vmatprep.subr.mxu0 0.0
        %982 = vmatpush1.msra.mxu0 0.0
        %983 = vmatprep.subr.mxu0 0.0
        %984 = vmatpush1.msra.mxu0 0.0
        %985 = vmatprep.subr.mxu0 0.0
        %986 = vmatpush1.msra.mxu0 0.0
        %987 = vmatprep.subr.mxu0 0.0
        %988 = vmatpush1.msra.mxu0 0.0
        %989 = vmatprep.subr.mxu0 0.0
        %990 = vmatpush1.msra.mxu0 0.0
        %991 = vmatprep.subr.mxu0 0.0
        %992 = vmatpush1.msra.mxu0 0.0
        %993 = vmatprep.subr.mxu0 0.0
        %994 = vmatpush1.msra.mxu0 0.0
        %995 = vmatprep.subr.mxu0 0.0
        %996 = vmatpush1.msra.mxu0 0.0
        %997 = vmatprep.subr.mxu0 0.0
        %998 = vmatpush1.msra.mxu0 0.0
        %999 = vmatprep.subr.mxu0 0.0
        %1000 = vmatpush1.msra.mxu0 0.0
        %1001 = vmatprep.subr.mxu0 0.0
        %1002 = vmatpush1.msra.mxu0 0.0
        %1003 = vmatprep.subr.mxu0 0.0
        %1004 = vmatpush1.msra.mxu0 %v965
        %1005 = vmatprep.subr.mxu0 0.0
        %1006 = vmatpush2.msra.mxu0 0.0
        %1007 = vmatprep.subr.mxu0 0.0
        %1008 = vmatpush2.msra.mxu0 0.0
        %1009 = vmatprep.subr.mxu0 0.0
        %1010 = vmatpush2.msra.mxu0 0.0
        %1011 = vmatprep.subr.mxu0 0.0
        %1012 = vmatpush2.msra.mxu0 0.0
        %1013 = vmatprep.subr.mxu0 0.0
        %1014 = vmatpush2.msra.mxu0 0.0
        %1015 = vmatprep.subr.mxu0 0.0
        %1016 = vmatpush2.msra.mxu0 0.0
        %1017 = vmatprep.subr.mxu0 0.0
        %1018 = vmatpush2.msra.mxu0 0.0
        %1019 = vmatprep.subr.mxu0 0.0
        %1020 = vmatpush2.msra.mxu0 0.0
        %1021 = vmatprep.subr.mxu0 0.0
        %1022 = vmatpush2.msra.mxu0 0.0
        %1023 = vmatprep.subr.mxu0 0.0
        %1024 = vmatpush2.msra.mxu0 0.0
        %1025 = vmatprep.subr.mxu0 0.0
        %1026 = vmatpush2.msra.mxu0 0.0
        %1027 = vmatprep.subr.mxu0 0.0
        %1028 = vmatpush2.msra.mxu0 0.0
        %1029 = vmatprep.subr.mxu0 0.0
        %1030 = vmatpush2.msra.mxu0 0.0
        %1031 = vmatprep.subr.mxu0 0.0
        %1032 = vmatpush2.msra.mxu0 0.0
        %1033 = vmatprep.subr.mxu0 0.0
        %1034 = vmatpush2.msra.mxu0 0.0
        %1035 = vmatprep.subr.mxu0 0.0
        %1036 = vmatpush2.msra.mxu0 0.0
        %1037 = vmatprep.mubr.f32.mxu0 0.0
        %1038 = vmatmul.mubr.f32.gmra.mxu0 %v971
        %v1039 = vpop.f32.mrf.mxu0
        %v1040 = vadd.f32 0.0, %v1039
        %v1041 = vpop.f32.mrf.mxu0
        %1042 = vdwg.mxu0
        %v1044 = vsel %vm969, %v250, 0
        %1046 = vmatprep.subr.mxu0 0.0
        %1047 = vmatpush1.msra.mxu0 0.0
        %1048 = vmatprep.subr.mxu0 0.0
        %1049 = vmatpush1.msra.mxu0 0.0
        %1050 = vmatprep.subr.mxu0 0.0
        %1051 = vmatpush1.msra.mxu0 0.0
        %1052 = vmatprep.subr.mxu0 0.0
        %1053 = vmatpush1.msra.mxu0 0.0
        %1054 = vmatprep.subr.mxu0 0.0
        %1055 = vmatpush1.msra.mxu0 0.0
        %1056 = vmatprep.subr.mxu0 0.0
        %1057 = vmatpush1.msra.mxu0 0.0
        %1058 = vmatprep.subr.mxu0 0.0
        %1059 = vmatpush1.msra.mxu0 0.0
        %1060 = vmatprep.subr.mxu0 0.0
        %1061 = vmatpush1.msra.mxu0 0.0
        %1062 = vmatprep.subr.mxu0 0.0
        %1063 = vmatpush1.msra.mxu0 0.0
        %1064 = vmatprep.subr.mxu0 0.0
        %1065 = vmatpush1.msra.mxu0 0.0
        %1066 = vmatprep.subr.mxu0 0.0
        %1067 = vmatpush1.msra.mxu0 0.0
        %1068 = vmatprep.subr.mxu0 0.0
        %1069 = vmatpush1.msra.mxu0 0.0
        %1070 = vmatprep.subr.mxu0 0.0
        %1071 = vmatpush1.msra.mxu0 0.0
        %1072 = vmatprep.subr.mxu0 0.0
        %1073 = vmatpush1.msra.mxu0 0.0
        %1074 = vmatprep.subr.mxu0 0.0
        %1075 = vmatpush1.msra.mxu0 0.0
        %1076 = vmatprep.subr.mxu0 0.0
        %1077 = vmatpush1.msra.mxu0 %v966
        %1078 = vmatprep.subr.mxu0 0.0
        %1079 = vmatpush2.msra.mxu0 0.0
        %1080 = vmatprep.subr.mxu0 0.0
        %1081 = vmatpush2.msra.mxu0 0.0
        %1082 = vmatprep.subr.mxu0 0.0
        %1083 = vmatpush2.msra.mxu0 0.0
        %1084 = vmatprep.subr.mxu0 0.0
        %1085 = vmatpush2.msra.mxu0 0.0
        %1086 = vmatprep.subr.mxu0 0.0
        %1087 = vmatpush2.msra.mxu0 0.0
        %1088 = vmatprep.subr.mxu0 0.0
        %1089 = vmatpush2.msra.mxu0 0.0
        %1090 = vmatprep.subr.mxu0 0.0
        %1091 = vmatpush2.msra.mxu0 0.0
        %1092 = vmatprep.subr.mxu0 0.0
        %1093 = vmatpush2.msra.mxu0 0.0
        %1094 = vmatprep.subr.mxu0 0.0
        %1095 = vmatpush2.msra.mxu0 0.0
        %1096 = vmatprep.subr.mxu0 0.0
        %1097 = vmatpush2.msra.mxu0 0.0
        %1098 = vmatprep.subr.mxu0 0.0
        %1099 = vmatpush2.msra.mxu0 0.0
        %1100 = vmatprep.subr.mxu0 0.0
        %1101 = vmatpush2.msra.mxu0 0.0
        %1102 = vmatprep.subr.mxu0 0.0
        %1103 = vmatpush2.msra.mxu0 0.0
        %1104 = vmatprep.subr.mxu0 0.0
        %1105 = vmatpush2.msra.mxu0 0.0
        %1106 = vmatprep.subr.mxu0 0.0
        %1107 = vmatpush2.msra.mxu0 0.0
        %1108 = vmatprep.subr.mxu0 0.0
        %1109 = vmatpush2.msra.mxu0 0.0
        %1110 = vmatprep.mubr.f32.mxu0 0.0
        %1111 = vmatmul.mubr.f32.gmra.mxu0 %v1044
        %v1112 = vpop.f32.mrf.mxu0
        %v1113 = vadd.f32 0.0, %v1112
        %v1114 = vpop.f32.mrf.mxu0
        %1115 = vdwg.mxu0
        %v1117 = vsel %vm969, %v251, 0
        %1119 = vmatprep.subr.mxu0 0.0
        %1120 = vmatpush1.msra.mxu0 0.0
        %1121 = vmatprep.subr.mxu0 0.0
        %1122 = vmatpush1.msra.mxu0 0.0
        %1123 = vmatprep.subr.mxu0 0.0
        %1124 = vmatpush1.msra.mxu0 0.0
        %1125 = vmatprep.subr.mxu0 0.0
        %1126 = vmatpush1.msra.mxu0 0.0
        %1127 = vmatprep.subr.mxu0 0.0
        %1128 = vmatpush1.msra.mxu0 0.0
        %1129 = vmatprep.subr.mxu0 0.0
        %1130 = vmatpush1.msra.mxu0 0.0
        %1131 = vmatprep.subr.mxu0 0.0
        %1132 = vmatpush1.msra.mxu0 0.0
        %1133 = vmatprep.subr.mxu0 0.0
        %1134 = vmatpush1.msra.mxu0 0.0
        %1135 = vmatprep.subr.mxu0 0.0
        %1136 = vmatpush1.msra.mxu0 0.0
        %1137 = vmatprep.subr.mxu0 0.0
        %1138 = vmatpush1.msra.mxu0 0.0
        %1139 = vmatprep.subr.mxu0 0.0
        %1140 = vmatpush1.msra.mxu0 0.0
        %1141 = vmatprep.subr.mxu0 0.0
        %1142 = vmatpush1.msra.mxu0 0.0
        %1143 = vmatprep.subr.mxu0 0.0
        %1144 = vmatpush1.msra.mxu0 0.0
        %1145 = vmatprep.subr.mxu0 0.0
        %1146 = vmatpush1.msra.mxu0 0.0
        %1147 = vmatprep.subr.mxu0 0.0
        %1148 = vmatpush1.msra.mxu0 0.0
        %1149 = vmatprep.subr.mxu0 0.0
        %1150 = vmatpush1.msra.mxu0 %v967
        %1151 = vmatprep.subr.mxu0 0.0
        %1152 = vmatpush2.msra.mxu0 0.0
        %1153 = vmatprep.subr.mxu0 0.0
        %1154 = vmatpush2.msra.mxu0 0.0
        %1155 = vmatprep.subr.mxu0 0.0
        %1156 = vmatpush2.msra.mxu0 0.0
        %1157 = vmatprep.subr.mxu0 0.0
        %1158 = vmatpush2.msra.mxu0 0.0
        %1159 = vmatprep.subr.mxu0 0.0
        %1160 = vmatpush2.msra.mxu0 0.0
        %1161 = vmatprep.subr.mxu0 0.0
        %1162 = vmatpush2.msra.mxu0 0.0
        %1163 = vmatprep.subr.mxu0 0.0
        %1164 = vmatpush2.msra.mxu0 0.0
        %1165 = vmatprep.subr.mxu0 0.0
        %1166 = vmatpush2.msra.mxu0 0.0
        %1167 = vmatprep.subr.mxu0 0.0
        %1168 = vmatpush2.msra.mxu0 0.0
        %1169 = vmatprep.subr.mxu0 0.0
        %1170 = vmatpush2.msra.mxu0 0.0
        %1171 = vmatprep.subr.mxu0 0.0
        %1172 = vmatpush2.msra.mxu0 0.0
        %1173 = vmatprep.subr.mxu0 0.0
        %1174 = vmatpush2.msra.mxu0 0.0
        %1175 = vmatprep.subr.mxu0 0.0
        %1176 = vmatpush2.msra.mxu0 0.0
        %1177 = vmatprep.subr.mxu0 0.0
        %1178 = vmatpush2.msra.mxu0 0.0
        %1179 = vmatprep.subr.mxu0 0.0
        %1180 = vmatpush2.msra.mxu0 0.0
        %1181 = vmatprep.subr.mxu0 0.0
        %1182 = vmatpush2.msra.mxu0 0.0
        %1183 = vmatprep.mubr.f32.mxu0 0.0
        %1184 = vmatmul.mubr.f32.gmra.mxu0 %v1117
        %v1185 = vpop.f32.mrf.mxu0
        %v1186 = vadd.f32 0.0, %v1185
        %v1187 = vpop.f32.mrf.mxu0
        %1188 = vdwg.mxu0
        %v1190 = vsel %vm969, %v252, 0
        %1192 = vmatprep.subr.mxu0 0.0
        %1193 = vmatpush1.msra.mxu0 0.0
        %1194 = vmatprep.subr.mxu0 0.0
        %1195 = vmatpush1.msra.mxu0 0.0
        %1196 = vmatprep.subr.mxu0 0.0
        %1197 = vmatpush1.msra.mxu0 0.0
        %1198 = vmatprep.subr.mxu0 0.0
        %1199 = vmatpush1.msra.mxu0 0.0
        %1200 = vmatprep.subr.mxu0 0.0
        %1201 = vmatpush1.msra.mxu0 0.0
        %1202 = vmatprep.subr.mxu0 0.0
        %1203 = vmatpush1.msra.mxu0 0.0
        %1204 = vmatprep.subr.mxu0 0.0
        %1205 = vmatpush1.msra.mxu0 0.0
        %1206 = vmatprep.subr.mxu0 0.0
        %1207 = vmatpush1.msra.mxu0 0.0
        %1208 = vmatprep.subr.mxu0 0.0
        %1209 = vmatpush1.msra.mxu0 0.0
        %1210 = vmatprep.subr.mxu0 0.0
        %1211 = vmatpush1.msra.mxu0 0.0
        %1212 = vmatprep.subr.mxu0 0.0
        %1213 = vmatpush1.msra.mxu0 0.0
        %1214 = vmatprep.subr.mxu0 0.0
        %1215 = vmatpush1.msra.mxu0 0.0
        %1216 = vmatprep.subr.mxu0 0.0
        %1217 = vmatpush1.msra.mxu0 0.0
        %1218 = vmatprep.subr.mxu0 0.0
        %1219 = vmatpush1.msra.mxu0 0.0
        %1220 = vmatprep.subr.mxu0 0.0
        %1221 = vmatpush1.msra.mxu0 0.0
        %1222 = vmatprep.subr.mxu0 0.0
        %1223 = vmatpush1.msra.mxu0 %v968
        %1224 = vmatprep.subr.mxu0 0.0
        %1225 = vmatpush2.msra.mxu0 0.0
        %1226 = vmatprep.subr.mxu0 0.0
        %1227 = vmatpush2.msra.mxu0 0.0
        %1228 = vmatprep.subr.mxu0 0.0
        %1229 = vmatpush2.msra.mxu0 0.0
        %1230 = vmatprep.subr.mxu0 0.0
        %1231 = vmatpush2.msra.mxu0 0.0
        %1232 = vmatprep.subr.mxu0 0.0
        %1233 = vmatpush2.msra.mxu0 0.0
        %1234 = vmatprep.subr.mxu0 0.0
        %1235 = vmatpush2.msra.mxu0 0.0
        %1236 = vmatprep.subr.mxu0 0.0
        %1237 = vmatpush2.msra.mxu0 0.0
        %1238 = vmatprep.subr.mxu0 0.0
        %1239 = vmatpush2.msra.mxu0 0.0
        %1240 = vmatprep.subr.mxu0 0.0
        %1241 = vmatpush2.msra.mxu0 0.0
        %1242 = vmatprep.subr.mxu0 0.0
        %1243 = vmatpush2.msra.mxu0 0.0
        %1244 = vmatprep.subr.mxu0 0.0
        %1245 = vmatpush2.msra.mxu0 0.0
        %1246 = vmatprep.subr.mxu0 0.0
        %1247 = vmatpush2.msra.mxu0 0.0
        %1248 = vmatprep.subr.mxu0 0.0
        %1249 = vmatpush2.msra.mxu0 0.0
        %1250 = vmatprep.subr.mxu0 0.0
        %1251 = vmatpush2.msra.mxu0 0.0
        %1252 = vmatprep.subr.mxu0 0.0
        %1253 = vmatpush2.msra.mxu0 0.0
        %1254 = vmatprep.subr.mxu0 0.0
        %1255 = vmatpush2.msra.mxu0 0.0
        %1256 = vmatprep.mubr.f32.mxu0 0.0
        %1257 = vmatmul.mubr.f32.gmra.mxu0 %v1190
        %v1258 = vpop.f32.mrf.mxu0
        %v1259 = vadd.f32 0.0, %v1258
        %v1260 = vpop.f32.mrf.mxu0
        %1261 = vdwg.mxu0
        %v1262 = vsel %vm969, %v1040, -inf
        %1263 = vmax.xlane.f32.xlu0 %v1262
        %v1264 = vpop.xlane.xlu0 %1263
        %v1265 = vsel %vm969, %v1113, -inf
        %1266 = vmax.xlane.f32.xlu0 %v1265
        %v1267 = vpop.xlane.xlu0 %1266
        %v1268 = vsel %vm969, %v1186, -inf
        %1269 = vmax.xlane.f32.xlu0 %v1268
        %v1270 = vpop.xlane.xlu0 %1269
        %v1271 = vsel %vm969, %v1259, -inf
        %1272 = vmax.xlane.f32.xlu0 %v1271
        %v1273 = vpop.xlane.xlu0 %1272
        %v1274 = vsub.f32 %v1040, %v1264
        %v1275 = vsub.f32 %v1113, %v1267
        %v1276 = vsub.f32 %v1186, %v1270
        %v1277 = vsub.f32 %v1259, %v1273
        %v1278 = vmul.f32 %v1274, 1.442695
        %v1279 = vpow.pop %v1278
        %v1280 = vmul.f32 %v1275, 1.442695
        %v1281 = vpow.pop %v1280
        %v1282 = vmul.f32 %v1276, 1.442695
        %v1283 = vpow.pop %v1282
        %v1284 = vmul.f32 %v1277, 1.442695
        %v1285 = vpow.pop %v1284
        %v1286 = vsel %vm969, %v1279, 0.0
        %1287 = vadd.xlane.f32.xlu0 %v1286
        %v1288 = vpop.xlane.xlu0 %1287
        %v1289 = vsel %vm969, %v1281, 0.0
        %1290 = vadd.xlane.f32.xlu0 %v1289
        %v1291 = vpop.xlane.xlu0 %1290
        %v1292 = vsel %vm969, %v1283, 0.0
        %1293 = vadd.xlane.f32.xlu0 %v1292
        %v1294 = vpop.xlane.xlu0 %1293
        %v1295 = vsel %vm969, %v1285, 0.0
        %1296 = vadd.xlane.f32.xlu0 %v1295
        %v1297 = vpop.xlane.xlu0 %1296
        %v1298 = vrcp.pop %v1288
        %v1299 = vrcp.pop %v1291
        %v1300 = vrcp.pop %v1294
        %v1301 = vrcp.pop %v1297
        %v1302 = vmul.f32 %v1279, %v1298
        %v1303 = vmul.f32 %v1281, %v1299
        %v1304 = vmul.f32 %v1283, %v1300
        %v1305 = vmul.f32 %v1285, %v1301
        %1306 = vst.msk [vmem:[%s143] sm:$0xff] %vm969, %v1302
        %1307 = vst.msk [vmem:[%s143 + $0x8] sm:$0xff] %vm969, %v1303
        %1308 = vst.msk [vmem:[%s143 + $0x10] sm:$0xff] %vm969, %v1304
        %1309 = vst.msk [vmem:[%s143 + $0x18] sm:$0xff] %vm969, %v1305
        %v1310 = vcombine.low %v155, %v161
        %v1312 = vunpack.c.l.s4 1983009808
        %v1313 = vunpack.c.0.s8 %v1312
        %v1314 = vlaneseq
        %v1315 = vshrl.u32 %v1314, 7
        %v1316 = vsub.s32 %v1313, %v1315
        %v1317 = vrot.slane %v1310, %v1316
        %v1318 = vcombine.low %v158, %v164
        %v1320 = vunpack.c.l.s4 1983009808
        %v1321 = vunpack.c.0.s8 %v1320
        %v1322 = vlaneseq
        %v1323 = vshrl.u32 %v1322, 7
        %v1324 = vsub.s32 %v1321, %v1323
        %v1325 = vrot.slane %v1318, %v1324
        %v1326 = vcombine.low %v167, %v173
        %v1328 = vunpack.c.l.s4 1983009808
        %v1329 = vunpack.c.0.s8 %v1328
        %v1330 = vlaneseq
        %v1331 = vshrl.u32 %v1330, 7
        %v1332 = vsub.s32 %v1329, %v1331
        %v1333 = vrot.slane %v1326, %v1332
        %v1334 = vcombine.low %v170, %v176
        %v1336 = vunpack.c.l.s4 1983009808
        %v1337 = vunpack.c.0.s8 %v1336
        %v1338 = vlaneseq
        %v1339 = vshrl.u32 %v1338, 7
        %v1340 = vsub.s32 %v1337, %v1339
        %v1341 = vrot.slane %v1334, %v1340
        %v1342 = vcombine.low %v1317, %v1325
        %v1343 = vcombine.high %v1317, %v1325
        %v1345 = vunpack.c.l.s4 1934713408
        %v1346 = vunpack.c.0.s8 %v1345
        %v1347 = vlaneseq
        %v1348 = vshrl.u32 %v1347, 7
        %v1349 = vsub.s32 %v1346, %v1348
        %v1350 = vrot.slane %v1342, %v1349
        %v1352 = vunpack.c.l.s4 1934713408
        %v1353 = vunpack.c.0.s8 %v1352
        %v1354 = vlaneseq
        %v1355 = vshrl.u32 %v1354, 7
        %v1356 = vsub.s32 %v1353, %v1355
        %v1357 = vrot.slane %v1343, %v1356
        %v1358 = vcombine.low %v1333, %v1341
        %v1359 = vcombine.high %v1333, %v1341
        %v1361 = vunpack.c.l.s4 1934713408
        %v1362 = vunpack.c.0.s8 %v1361
        %v1363 = vlaneseq
        %v1364 = vshrl.u32 %v1363, 7
        %v1365 = vsub.s32 %v1362, %v1364
        %v1366 = vrot.slane %v1358, %v1365
        %v1368 = vunpack.c.l.s4 1934713408
        %v1369 = vunpack.c.0.s8 %v1368
        %v1370 = vlaneseq
        %v1371 = vshrl.u32 %v1370, 7
        %v1372 = vsub.s32 %v1369, %v1371
        %v1373 = vrot.slane %v1359, %v1372
        %v1374 = vcombine.low %v1350, %v1366
        %v1375 = vcombine.high %v1350, %v1366
        %v1376 = vcombine.low %v1357, %v1373
        %v1377 = vcombine.high %v1357, %v1373
        %v1379 = vsel %vm969, %v1302, 0
        %1381 = vmatprep.subr.mxu0 0.0
        %1382 = vmatpush1.msra.mxu0 0.0
        %1383 = vmatprep.subr.mxu0 0.0
        %1384 = vmatpush1.msra.mxu0 0.0
        %1385 = vmatprep.subr.mxu0 0.0
        %1386 = vmatpush1.msra.mxu0 0.0
        %1387 = vmatprep.subr.mxu0 0.0
        %1388 = vmatpush1.msra.mxu0 0.0
        %1389 = vmatprep.subr.mxu0 0.0
        %1390 = vmatpush1.msra.mxu0 0.0
        %1391 = vmatprep.subr.mxu0 0.0
        %1392 = vmatpush1.msra.mxu0 0.0
        %1393 = vmatprep.subr.mxu0 0.0
        %1394 = vmatpush1.msra.mxu0 0.0
        %1395 = vmatprep.subr.mxu0 0.0
        %1396 = vmatpush1.msra.mxu0 0.0
        %1397 = vmatprep.subr.mxu0 0.0
        %1398 = vmatpush1.msra.mxu0 0.0
        %1399 = vmatprep.subr.mxu0 0.0
        %1400 = vmatpush1.msra.mxu0 0.0
        %1401 = vmatprep.subr.mxu0 0.0
        %1402 = vmatpush1.msra.mxu0 0.0
        %1403 = vmatprep.subr.mxu0 0.0
        %1404 = vmatpush1.msra.mxu0 0.0
        %1405 = vmatprep.subr.mxu0 0.0
        %1406 = vmatpush1.msra.mxu0 0.0
        %1407 = vmatprep.subr.mxu0 0.0
        %1408 = vmatpush1.msra.mxu0 0.0
        %1409 = vmatprep.subr.mxu0 0.0
        %1410 = vmatpush1.msra.mxu0 0.0
        %1411 = vmatprep.subr.mxu0 0.0
        %1412 = vmatpush1.msra.mxu0 %v1374
        %1413 = vmatprep.subr.mxu0 0.0
        %1414 = vmatpush2.msra.mxu0 0.0
        %1415 = vmatprep.subr.mxu0 0.0
        %1416 = vmatpush2.msra.mxu0 0.0
        %1417 = vmatprep.subr.mxu0 0.0
        %1418 = vmatpush2.msra.mxu0 0.0
        %1419 = vmatprep.subr.mxu0 0.0
        %1420 = vmatpush2.msra.mxu0 0.0
        %1421 = vmatprep.subr.mxu0 0.0
        %1422 = vmatpush2.msra.mxu0 0.0
        %1423 = vmatprep.subr.mxu0 0.0
        %1424 = vmatpush2.msra.mxu0 0.0
        %1425 = vmatprep.subr.mxu0 0.0
        %1426 = vmatpush2.msra.mxu0 0.0
        %1427 = vmatprep.subr.mxu0 0.0
        %1428 = vmatpush2.msra.mxu0 0.0
        %1429 = vmatprep.subr.mxu0 0.0
        %1430 = vmatpush2.msra.mxu0 0.0
        %1431 = vmatprep.subr.mxu0 0.0
        %1432 = vmatpush2.msra.mxu0 0.0
        %1433 = vmatprep.subr.mxu0 0.0
        %1434 = vmatpush2.msra.mxu0 0.0
        %1435 = vmatprep.subr.mxu0 0.0
        %1436 = vmatpush2.msra.mxu0 0.0
        %1437 = vmatprep.subr.mxu0 0.0
        %1438 = vmatpush2.msra.mxu0 0.0
        %1439 = vmatprep.subr.mxu0 0.0
        %1440 = vmatpush2.msra.mxu0 0.0
        %1441 = vmatprep.subr.mxu0 0.0
        %1442 = vmatpush2.msra.mxu0 0.0
        %1443 = vmatprep.subr.mxu0 0.0
        %1444 = vmatpush2.msra.mxu0 0.0
        %1445 = vmatprep.mubr.f32.mxu0 0.0
        %1446 = vmatmul.mubr.f32.gmra.mxu0 %v1379
        %v1447 = vpop.f32.mrf.mxu0
        %v1448 = vadd.f32 0.0, %v1447
        %v1449 = vpop.f32.mrf.mxu0
        %1450 = vdwg.mxu0
        %v1452 = vsel %vm969, %v1303, 0
        %1454 = vmatprep.subr.mxu0 0.0
        %1455 = vmatpush1.msra.mxu0 0.0
        %1456 = vmatprep.subr.mxu0 0.0
        %1457 = vmatpush1.msra.mxu0 0.0
        %1458 = vmatprep.subr.mxu0 0.0
        %1459 = vmatpush1.msra.mxu0 0.0
        %1460 = vmatprep.subr.mxu0 0.0
        %1461 = vmatpush1.msra.mxu0 0.0
        %1462 = vmatprep.subr.mxu0 0.0
        %1463 = vmatpush1.msra.mxu0 0.0
        %1464 = vmatprep.subr.mxu0 0.0
        %1465 = vmatpush1.msra.mxu0 0.0
        %1466 = vmatprep.subr.mxu0 0.0
        %1467 = vmatpush1.msra.mxu0 0.0
        %1468 = vmatprep.subr.mxu0 0.0
        %1469 = vmatpush1.msra.mxu0 0.0
        %1470 = vmatprep.subr.mxu0 0.0
        %1471 = vmatpush1.msra.mxu0 0.0
        %1472 = vmatprep.subr.mxu0 0.0
        %1473 = vmatpush1.msra.mxu0 0.0
        %1474 = vmatprep.subr.mxu0 0.0
        %1475 = vmatpush1.msra.mxu0 0.0
        %1476 = vmatprep.subr.mxu0 0.0
        %1477 = vmatpush1.msra.mxu0 0.0
        %1478 = vmatprep.subr.mxu0 0.0
        %1479 = vmatpush1.msra.mxu0 0.0
        %1480 = vmatprep.subr.mxu0 0.0
        %1481 = vmatpush1.msra.mxu0 0.0
        %1482 = vmatprep.subr.mxu0 0.0
        %1483 = vmatpush1.msra.mxu0 0.0
        %1484 = vmatprep.subr.mxu0 0.0
        %1485 = vmatpush1.msra.mxu0 %v1375
        %1486 = vmatprep.subr.mxu0 0.0
        %1487 = vmatpush2.msra.mxu0 0.0
        %1488 = vmatprep.subr.mxu0 0.0
        %1489 = vmatpush2.msra.mxu0 0.0
        %1490 = vmatprep.subr.mxu0 0.0
        %1491 = vmatpush2.msra.mxu0 0.0
        %1492 = vmatprep.subr.mxu0 0.0
        %1493 = vmatpush2.msra.mxu0 0.0
        %1494 = vmatprep.subr.mxu0 0.0
        %1495 = vmatpush2.msra.mxu0 0.0
        %1496 = vmatprep.subr.mxu0 0.0
        %1497 = vmatpush2.msra.mxu0 0.0
        %1498 = vmatprep.subr.mxu0 0.0
        %1499 = vmatpush2.msra.mxu0 0.0
        %1500 = vmatprep.subr.mxu0 0.0
        %1501 = vmatpush2.msra.mxu0 0.0
        %1502 = vmatprep.subr.mxu0 0.0
        %1503 = vmatpush2.msra.mxu0 0.0
        %1504 = vmatprep.subr.mxu0 0.0
        %1505 = vmatpush2.msra.mxu0 0.0
        %1506 = vmatprep.subr.mxu0 0.0
        %1507 = vmatpush2.msra.mxu0 0.0
        %1508 = vmatprep.subr.mxu0 0.0
        %1509 = vmatpush2.msra.mxu0 0.0
        %1510 = vmatprep.subr.mxu0 0.0
        %1511 = vmatpush2.msra.mxu0 0.0
        %1512 = vmatprep.subr.mxu0 0.0
        %1513 = vmatpush2.msra.mxu0 0.0
        %1514 = vmatprep.subr.mxu0 0.0
        %1515 = vmatpush2.msra.mxu0 0.0
        %1516 = vmatprep.subr.mxu0 0.0
        %1517 = vmatpush2.msra.mxu0 0.0
        %1518 = vmatprep.mubr.f32.mxu0 0.0
        %1519 = vmatmul.mubr.f32.gmra.mxu0 %v1452
        %v1520 = vpop.f32.mrf.mxu0
        %v1521 = vadd.f32 0.0, %v1520
        %v1522 = vpop.f32.mrf.mxu0
        %1523 = vdwg.mxu0
        %v1525 = vsel %vm969, %v1304, 0
        %1527 = vmatprep.subr.mxu0 0.0
        %1528 = vmatpush1.msra.mxu0 0.0
        %1529 = vmatprep.subr.mxu0 0.0
        %1530 = vmatpush1.msra.mxu0 0.0
        %1531 = vmatprep.subr.mxu0 0.0
        %1532 = vmatpush1.msra.mxu0 0.0
        %1533 = vmatprep.subr.mxu0 0.0
        %1534 = vmatpush1.msra.mxu0 0.0
        %1535 = vmatprep.subr.mxu0 0.0
        %1536 = vmatpush1.msra.mxu0 0.0
        %1537 = vmatprep.subr.mxu0 0.0
        %1538 = vmatpush1.msra.mxu0 0.0
        %1539 = vmatprep.subr.mxu0 0.0
        %1540 = vmatpush1.msra.mxu0 0.0
        %1541 = vmatprep.subr.mxu0 0.0
        %1542 = vmatpush1.msra.mxu0 0.0
        %1543 = vmatprep.subr.mxu0 0.0
        %1544 = vmatpush1.msra.mxu0 0.0
        %1545 = vmatprep.subr.mxu0 0.0
        %1546 = vmatpush1.msra.mxu0 0.0
        %1547 = vmatprep.subr.mxu0 0.0
        %1548 = vmatpush1.msra.mxu0 0.0
        %1549 = vmatprep.subr.mxu0 0.0
        %1550 = vmatpush1.msra.mxu0 0.0
        %1551 = vmatprep.subr.mxu0 0.0
        %1552 = vmatpush1.msra.mxu0 0.0
        %1553 = vmatprep.subr.mxu0 0.0
        %1554 = vmatpush1.msra.mxu0 0.0
        %1555 = vmatprep.subr.mxu0 0.0
        %1556 = vmatpush1.msra.mxu0 0.0
        %1557 = vmatprep.subr.mxu0 0.0
        %1558 = vmatpush1.msra.mxu0 %v1376
        %1559 = vmatprep.subr.mxu0 0.0
        %1560 = vmatpush2.msra.mxu0 0.0
        %1561 = vmatprep.subr.mxu0 0.0
        %1562 = vmatpush2.msra.mxu0 0.0
        %1563 = vmatprep.subr.mxu0 0.0
        %1564 = vmatpush2.msra.mxu0 0.0
        %1565 = vmatprep.subr.mxu0 0.0
        %1566 = vmatpush2.msra.mxu0 0.0
        %1567 = vmatprep.subr.mxu0 0.0
        %1568 = vmatpush2.msra.mxu0 0.0
        %1569 = vmatprep.subr.mxu0 0.0
        %1570 = vmatpush2.msra.mxu0 0.0
        %1571 = vmatprep.subr.mxu0 0.0
        %1572 = vmatpush2.msra.mxu0 0.0
        %1573 = vmatprep.subr.mxu0 0.0
        %1574 = vmatpush2.msra.mxu0 0.0
        %1575 = vmatprep.subr.mxu0 0.0
        %1576 = vmatpush2.msra.mxu0 0.0
        %1577 = vmatprep.subr.mxu0 0.0
        %1578 = vmatpush2.msra.mxu0 0.0
        %1579 = vmatprep.subr.mxu0 0.0
        %1580 = vmatpush2.msra.mxu0 0.0
        %1581 = vmatprep.subr.mxu0 0.0
        %1582 = vmatpush2.msra.mxu0 0.0
        %1583 = vmatprep.subr.mxu0 0.0
        %1584 = vmatpush2.msra.mxu0 0.0
        %1585 = vmatprep.subr.mxu0 0.0
        %1586 = vmatpush2.msra.mxu0 0.0
        %1587 = vmatprep.subr.mxu0 0.0
        %1588 = vmatpush2.msra.mxu0 0.0
        %1589 = vmatprep.subr.mxu0 0.0
        %1590 = vmatpush2.msra.mxu0 0.0
        %1591 = vmatprep.mubr.f32.mxu0 0.0
        %1592 = vmatmul.mubr.f32.gmra.mxu0 %v1525
        %v1593 = vpop.f32.mrf.mxu0
        %v1594 = vadd.f32 0.0, %v1593
        %v1595 = vpop.f32.mrf.mxu0
        %1596 = vdwg.mxu0
        %v1598 = vsel %vm969, %v1305, 0
        %1600 = vmatprep.subr.mxu0 0.0
        %1601 = vmatpush1.msra.mxu0 0.0
        %1602 = vmatprep.subr.mxu0 0.0
        %1603 = vmatpush1.msra.mxu0 0.0
        %1604 = vmatprep.subr.mxu0 0.0
        %1605 = vmatpush1.msra.mxu0 0.0
        %1606 = vmatprep.subr.mxu0 0.0
        %1607 = vmatpush1.msra.mxu0 0.0
        %1608 = vmatprep.subr.mxu0 0.0
        %1609 = vmatpush1.msra.mxu0 0.0
        %1610 = vmatprep.subr.mxu0 0.0
        %1611 = vmatpush1.msra.mxu0 0.0
        %1612 = vmatprep.subr.mxu0 0.0
        %1613 = vmatpush1.msra.mxu0 0.0
        %1614 = vmatprep.subr.mxu0 0.0
        %1615 = vmatpush1.msra.mxu0 0.0
        %1616 = vmatprep.subr.mxu0 0.0
        %1617 = vmatpush1.msra.mxu0 0.0
        %1618 = vmatprep.subr.mxu0 0.0
        %1619 = vmatpush1.msra.mxu0 0.0
        %1620 = vmatprep.subr.mxu0 0.0
        %1621 = vmatpush1.msra.mxu0 0.0
        %1622 = vmatprep.subr.mxu0 0.0
        %1623 = vmatpush1.msra.mxu0 0.0
        %1624 = vmatprep.subr.mxu0 0.0
        %1625 = vmatpush1.msra.mxu0 0.0
        %1626 = vmatprep.subr.mxu0 0.0
        %1627 = vmatpush1.msra.mxu0 0.0
        %1628 = vmatprep.subr.mxu0 0.0
        %1629 = vmatpush1.msra.mxu0 0.0
        %1630 = vmatprep.subr.mxu0 0.0
        %1631 = vmatpush1.msra.mxu0 %v1377
        %1632 = vmatprep.subr.mxu0 0.0
        %1633 = vmatpush2.msra.mxu0 0.0
        %1634 = vmatprep.subr.mxu0 0.0
        %1635 = vmatpush2.msra.mxu0 0.0
        %1636 = vmatprep.subr.mxu0 0.0
        %1637 = vmatpush2.msra.mxu0 0.0
        %1638 = vmatprep.subr.mxu0 0.0
        %1639 = vmatpush2.msra.mxu0 0.0
        %1640 = vmatprep.subr.mxu0 0.0
        %1641 = vmatpush2.msra.mxu0 0.0
        %1642 = vmatprep.subr.mxu0 0.0
        %1643 = vmatpush2.msra.mxu0 0.0
        %1644 = vmatprep.subr.mxu0 0.0
        %1645 = vmatpush2.msra.mxu0 0.0
        %1646 = vmatprep.subr.mxu0 0.0
        %1647 = vmatpush2.msra.mxu0 0.0
        %1648 = vmatprep.subr.mxu0 0.0
        %1649 = vmatpush2.msra.mxu0 0.0
        %1650 = vmatprep.subr.mxu0 0.0
        %1651 = vmatpush2.msra.mxu0 0.0
        %1652 = vmatprep.subr.mxu0 0.0
        %1653 = vmatpush2.msra.mxu0 0.0
        %1654 = vmatprep.subr.mxu0 0.0
        %1655 = vmatpush2.msra.mxu0 0.0
        %1656 = vmatprep.subr.mxu0 0.0
        %1657 = vmatpush2.msra.mxu0 0.0
        %1658 = vmatprep.subr.mxu0 0.0
        %1659 = vmatpush2.msra.mxu0 0.0
        %1660 = vmatprep.subr.mxu0 0.0
        %1661 = vmatpush2.msra.mxu0 0.0
        %1662 = vmatprep.subr.mxu0 0.0
        %1663 = vmatpush2.msra.mxu0 0.0
        %1664 = vmatprep.mubr.f32.mxu0 0.0
        %1665 = vmatmul.mubr.f32.gmra.mxu0 %v1598
        %v1666 = vpop.f32.mrf.mxu0
        %v1667 = vadd.f32 0.0, %v1666
        %v1668 = vpop.f32.mrf.mxu0
        %1669 = vdwg.mxu0
        %v1670 = vcombine.low %v1448, %v1594
        %v1671 = vcombine.high %v1448, %v1594
        %v1673 = vunpack.c.l.s4 1983009808
        %v1674 = vunpack.c.0.s8 %v1673
        %v1675 = vlaneseq
        %v1676 = vshrl.u32 %v1675, 7
        %v1677 = vsub.s32 %v1674, %v1676
        %v1678 = vrot.slane %v1670, %v1677
        %v1680 = vunpack.c.l.s4 1983009808
        %v1681 = vunpack.c.0.s8 %v1680
        %v1682 = vlaneseq
        %v1683 = vshrl.u32 %v1682, 7
        %v1684 = vsub.s32 %v1681, %v1683
        %v1685 = vrot.slane %v1671, %v1684
        %v1686 = vcombine.low %v1521, %v1667
        %v1687 = vcombine.high %v1521, %v1667
        %v1689 = vunpack.c.l.s4 1983009808
        %v1690 = vunpack.c.0.s8 %v1689
        %v1691 = vlaneseq
        %v1692 = vshrl.u32 %v1691, 7
        %v1693 = vsub.s32 %v1690, %v1692
        %v1694 = vrot.slane %v1686, %v1693
        %v1696 = vunpack.c.l.s4 1983009808
        %v1697 = vunpack.c.0.s8 %v1696
        %v1698 = vlaneseq
        %v1699 = vshrl.u32 %v1698, 7
        %v1700 = vsub.s32 %v1697, %v1699
        %v1701 = vrot.slane %v1687, %v1700
        %v1702 = vcombine.low %v1678, %v1694
        %v1703 = vcombine.high %v1678, %v1694
        %v1705 = vunpack.c.l.s4 1934713408
        %v1706 = vunpack.c.0.s8 %v1705
        %v1707 = vlaneseq
        %v1708 = vshrl.u32 %v1707, 7
        %v1709 = vsub.s32 %v1706, %v1708
        %v1710 = vrot.slane %v1702, %v1709
        %v1712 = vunpack.c.l.s4 1934713408
        %v1713 = vunpack.c.0.s8 %v1712
        %v1714 = vlaneseq
        %v1715 = vshrl.u32 %v1714, 7
        %v1716 = vsub.s32 %v1713, %v1715
        %v1717 = vrot.slane %v1703, %v1716
        %v1718 = vcombine.low %v1685, %v1701
        %v1719 = vcombine.high %v1685, %v1701
        %v1721 = vunpack.c.l.s4 1934713408
        %v1722 = vunpack.c.0.s8 %v1721
        %v1723 = vlaneseq
        %v1724 = vshrl.u32 %v1723, 7
        %v1725 = vsub.s32 %v1722, %v1724
        %v1726 = vrot.slane %v1718, %v1725
        %v1728 = vunpack.c.l.s4 1934713408
        %v1729 = vunpack.c.0.s8 %v1728
        %v1730 = vlaneseq
        %v1731 = vshrl.u32 %v1730, 7
        %v1732 = vsub.s32 %v1729, %v1731
        %v1733 = vrot.slane %v1719, %v1732
        %v1734 = vcombine.high %v1710, 0.0
        %v1735 = vcombine.high %v1717, 0.0
        %v1736 = vcombine.high %v1726, 0.0
        %v1737 = vcombine.high %v1733, 0.0
        %v1738 = vcombine.low %v1710, %v1717
        %v1740 = vunpack.c.l.s4 1983009808
        %v1741 = vunpack.c.0.s8 %v1740
        %v1742 = vlaneseq
        %v1743 = vshrl.u32 %v1742, 7
        %v1744 = vsub.s32 %v1741, %v1743
        %v1745 = vrot.slane %v1738, %v1744
        %v1746 = vcombine.low %v1734, %v1735
        %v1748 = vunpack.c.l.s4 1983009808
        %v1749 = vunpack.c.0.s8 %v1748
        %v1750 = vlaneseq
        %v1751 = vshrl.u32 %v1750, 7
        %v1752 = vsub.s32 %v1749, %v1751
        %v1753 = vrot.slane %v1746, %v1752
        %v1754 = vcombine.low %v1726, %v1733
        %v1756 = vunpack.c.l.s4 1983009808
        %v1757 = vunpack.c.0.s8 %v1756
        %v1758 = vlaneseq
        %v1759 = vshrl.u32 %v1758, 7
        %v1760 = vsub.s32 %v1757, %v1759
        %v1761 = vrot.slane %v1754, %v1760
        %v1762 = vcombine.low %v1736, %v1737
        %v1764 = vunpack.c.l.s4 1983009808
        %v1765 = vunpack.c.0.s8 %v1764
        %v1766 = vlaneseq
        %v1767 = vshrl.u32 %v1766, 7
        %v1768 = vsub.s32 %v1765, %v1767
        %v1769 = vrot.slane %v1762, %v1768
        %v1770 = vcombine.low %v1745, %v1753
        %v1771 = vcombine.high %v1745, %v1753
        %v1773 = vunpack.c.l.s4 1934713408
        %v1774 = vunpack.c.0.s8 %v1773
        %v1775 = vlaneseq
        %v1776 = vshrl.u32 %v1775, 7
        %v1777 = vsub.s32 %v1774, %v1776
        %v1778 = vrot.slane %v1770, %v1777
        %v1780 = vunpack.c.l.s4 1934713408
        %v1781 = vunpack.c.0.s8 %v1780
        %v1782 = vlaneseq
        %v1783 = vshrl.u32 %v1782, 7
        %v1784 = vsub.s32 %v1781, %v1783
        %v1785 = vrot.slane %v1771, %v1784
        %v1786 = vcombine.low %v1761, %v1769
        %v1787 = vcombine.high %v1761, %v1769
        %v1789 = vunpack.c.l.s4 1934713408
        %v1790 = vunpack.c.0.s8 %v1789
        %v1791 = vlaneseq
        %v1792 = vshrl.u32 %v1791, 7
        %v1793 = vsub.s32 %v1790, %v1792
        %v1794 = vrot.slane %v1786, %v1793
        %v1796 = vunpack.c.l.s4 1934713408
        %v1797 = vunpack.c.0.s8 %v1796
        %v1798 = vlaneseq
        %v1799 = vshrl.u32 %v1798, 7
        %v1800 = vsub.s32 %v1797, %v1799
        %v1801 = vrot.slane %v1787, %v1800
        %v1802 = vcombine.low %v1778, %v1794
        %v1803 = vcombine.high %v1778, %v1794
        %v1804 = vcombine.low %v1785, %v1801
        %v1805 = vcombine.high %v1785, %v1801
        %1807 = vrot.lane.b32.xlu0 %v1803, 8
        %v1808 = vpop.permute.xlu0 %1807
        %1811 = vrot.lane.b32.xlu0 %v1804, 16
        %v1812 = vpop.permute.xlu0 %1811
        %1815 = vrot.lane.b32.xlu0 %v1805, 24
        %v1816 = vpop.permute.xlu0 %1815
        %v1818 = vsel %vm969, %v1802, %v1808
        %vm1819 = vcmask 130048
        %v1820 = vsel %vm1819, %v1818, %v1812
        %vm1821 = vcmask 195584
        %v1822 = vsel %vm1821, %v1820, %v1816
        %vm1823 = vcmask 261120
        %1824 = vst.msk [vmem:[%s152] sm:$0xff] %vm1823, %v1822
        %p1825 = scmp.lt.s32.totalorder %s17, 1
        %s1826 = scalar_select %p1825, %s17, 1
        %s1827 = smul.addr %s1826, 8
        %s1828 = scalar_lea.vmem %s1, %s1827
        %s1829 = sand.u32 %s77, 1
        %s1830 = scalar_lea.sflag [#allocation3], %s1829
        %s1831 = sand.u32 %s77, 1
        %s1832 = smul.addr %s1831, 32
        %s1833 = scalar_lea.vmem [#allocation2], %s1832
        // Predicated region
        $region25: #{attention_forward.4} parent=23 // pred_check
          %p1834 = pneg %p61
        $region26: #{attention_forward.4} parent=23 // pred_check_branch
          %1836 = sbr.rel (%p1834) target = $region28
        $region27: #{attention_forward.4} parent=23 // pred_region
          _
        $region28: #{attention_forward.4} parent=23 // pred_fallthru
          _
        // Predicated region
        $region29: #{attention_forward.4} parent=23 // pred_check
          %p1837 = pneg %p87
        $region30: #{attention_forward.4} parent=23 // pred_check_branch
          %1839 = sbr.rel (%p1837) target = $region32
        $region31: #{attention_forward.4} parent=23 // pred_region
          %s1841 = ssub.s32 512, 512
          %1842 = vsyncadd %s1830, %s1841
          %s1843 = smul.addr %s17, 4
          %s1844 = smul.addr %s1843, 128
          %s1845 = scalar_lea.hbm %s2, %s1844
          %s1846 = sshll.u32 %s1833, 4
          %s1847 = int_to_ptr.vmem [resolvable:$true] %s1846
          %1852 = dma.vmem_to_hbm [thread:$0]  %s1847, 512, %s1845, %s1830, 128, 128, 8
        $region32: #{attention_forward.4} parent=23 // pred_fallthru
          _
      $region24: #{attention_forward.4} parent=5 // pred_fallthru
        _
      %p1853 = scmp.le.s32.totalorder 2, %s12
      // Predicated region
      $region33: #{attention_forward.4} parent=5 // pred_check
        %p1854 = pneg %p1853
      $region34: #{attention_forward.4} parent=5 // pred_check_branch
        %1856 = sbr.rel (%p1854) target = $region36
      $region35: #{attention_forward.4} parent=5 // pred_region
        %s1857 = ssub.s32 %s12, 2
        // Predicated region
        $region37: #{attention_forward.4} parent=35 // pred_check
          %p1858 = pneg %p67
        $region38: #{attention_forward.4} parent=35 // pred_check_branch
          %1860 = sbr.rel (%p1858) target = $region40
        $region39: #{attention_forward.4} parent=35 // pred_region
          %p1861 = scmp.lt.s32.totalorder %s18, 1
          %s1862 = scalar_select %p1861, %s18, 1
          %s1863 = smul.addr %s1862, 8
          %s1864 = scalar_lea.vmem %s1, %s1863
        $region40: #{attention_forward.4} parent=35 // pred_fallthru
          _
        // Predicated region
        $region41: #{attention_forward.4} parent=35 // pred_check
          %p1865 = pneg %p93
        $region42: #{attention_forward.4} parent=35 // pred_check_branch
          %1867 = sbr.rel (%p1865) target = $region44
        $region43: #{attention_forward.4} parent=35 // pred_region
          %s1868 = sand.u32 %s78, 1
          %s1869 = scalar_lea.sflag [#allocation3], %s1868
          %s1870 = sand.u32 %s78, 1
          %s1871 = smul.addr %s1870, 32
          %s1872 = scalar_lea.vmem [#allocation2], %s1871
          %1873 = dma.done %s1869, 512
        $region44: #{attention_forward.4} parent=35 // pred_fallthru
          _
      $region36: #{attention_forward.4} parent=5 // pred_fallthru
        _
    $region6: #{attention_forward.4} parent=1 // loop_footer
      %s16 = sadd.s32 1, %s12
    $region7: #{attention_forward.4} parent=1 // loop_footer_branch
      %11 = sbr.rel target = $region3
    $region8: #{attention_forward.4} parent=1 // loop_exit
      _
    %1874 = vsyncpa [#allocation3], 1
    %s1875 = scalar_lea.sflag [#allocation3], 1
    %1876 = vsyncpa %s1875, 1

</llo_original>
